<compile_context>
chip_gen: v6e
topology: v6e:2x2x1
jax: 0.10.0
libtpu: 0.0.40
codegen_flags: <defaults>
</compile_context>

<pallas_src>
import functools
import math

import jax
import jax.numpy as jnp
from jax.experimental import pallas as pl
from jax.experimental.pallas import tpu as pltpu


# ----------------------------------------------------------------------------- kernel

def _encoder_kernel(x_ref, wqkv_ref, bqkv_ref, wo_ref, bo_ref,
                    ln0a_ref, ln0b_ref, ln1a_ref, ln1b_ref,
                    w1_ref, b1_ref, w2_ref, b2_ref,
                    na_ref, nb_ref, o_ref, acc_ref, *, n_heads, seq, eps):
    l = pl.program_id(1)
    n_layers = pl.num_programs(1)
    M, D = x_ref.shape                      # M = TB * seq rows of the residual stream
    TB = M // seq
    d_k = D // n_heads
    scale = 1.0 / math.sqrt(d_k)

    @pl.when(l == 0)
    def _():                                # load this batch tile's residual once per tile
        acc_ref[...] = x_ref[...].astype(jnp.float32)

    def layer_norm(v, a, b):
        # custom LayerNorm: unbiased (n-1) variance, eps added to std (not var)
        mean = jnp.mean(v, axis=-1, keepdims=True)
        diff = v - mean
        var = jnp.sum(diff * diff, axis=-1, keepdims=True) * (1.0 / (D - 1))
        inv = pl.reciprocal(jnp.sqrt(var) + eps, approx=True)   # EUP slot, one per row
        return a * (diff * inv) + b

    x = acc_ref[...]                        # (M, D) f32 residual (kept in f32)

    # ---- sublayer 0: x = x + SelfAttn(LN0(x)) -------------------------------------
    xn = layer_norm(x, ln0a_ref[0], ln0b_ref[0])
    # fused Q|K|V projection: bf16 x bf16 -> f32 accumulate on the MXU
    qkv = jnp.dot(xn.astype(jnp.bfloat16), wqkv_ref[0],
                  preferred_element_type=jnp.float32) + bqkv_ref[0]      # (M, 3D) f32
    qkv3 = qkv.reshape(TB, seq, 3 * D).astype(jnp.bfloat16)  # leading-dim split only
    q3 = qkv3[:, :, :D]
    k3 = qkv3[:, :, D:2 * D]
    v3 = qkv3[:, :, 2 * D:]
    wo = wo_ref[0]                                            # (D, D) bf16

    attn = jnp.zeros((M, D), jnp.float32)
    # Per-head dots use the single-leading-batch-dim pattern Mosaic lowers natively;
    # head outputs are folded into the output projection so there is no concat, no
    # per-head relayout into a Python list, and only one (M, D) accumulator is live.
    # TODO(synk): at real d_k >= 128 the h*d_k lane slices are aligned; at toy d_k=8
    #             they imply small relayouts (negligible here).
    for h in range(n_heads):
        sl = slice(h * d_k, (h + 1) * d_k)
        qh, kh, vh = q3[..., sl], k3[..., sl], v3[..., sl]    # (TB, S, d_k) bf16
        s = jnp.einsum('bqd,bkd->bqk', qh, kh,
                       preferred_element_type=jnp.float32) * scale
        s = s - jnp.max(s, axis=-1, keepdims=True)
        p = jnp.exp(s)
        p = p * pl.reciprocal(jnp.sum(p, axis=-1, keepdims=True), approx=True)
        ctx = jnp.einsum('bqk,bkd->bqd', p.astype(jnp.bfloat16), vh,
                         preferred_element_type=jnp.float32)  # (TB, S, d_k) f32
        attn = attn + jnp.dot(ctx.reshape(M, d_k).astype(jnp.bfloat16), wo[sl, :],
                              preferred_element_type=jnp.float32)
    x = x + attn + bo_ref[0]

    # ---- sublayer 1: x = x + FFN(LN1(x)) -------------------------------------------
    xn = layer_norm(x, ln1a_ref[0], ln1b_ref[0])
    h1 = jnp.dot(xn.astype(jnp.bfloat16), w1_ref[0],
                 preferred_element_type=jnp.float32) + b1_ref[0]
    h1 = jnp.maximum(h1, 0.0)
    h2 = jnp.dot(h1.astype(jnp.bfloat16), w2_ref[0],
                 preferred_element_type=jnp.float32) + b2_ref[0]
    x = x + h2

    acc_ref[...] = x                        # carry residual to the next layer step

    @pl.when(l == n_layers - 1)
    def _():                                # final LayerNorm, stored once per batch tile
        y = layer_norm(x, na_ref[...], nb_ref[...])
        o_ref[...] = y.astype(o_ref.dtype)


# ----------------------------------------------------------------------------- wrapper

def encoder_forward(x, mask, params, n_heads, eps=1e-6):
    # TODO(synk): masked_fill(mask == 0, -1e9) attention branch not implemented.
    assert mask is None, "attention-mask path not implemented in the Pallas kernel"
    B, S, D = x.shape
    L = params["wqkv"].shape[0]
    assert params["wqkv"].shape[-1] == 3 * D and D % n_heads == 0

    # Batch tiling: fold batch elements so the projection/FFN matmuls see M = TB*S rows
    # (fills the MXU, amortizes per-grid-step overhead); prefer >=256 rows per tile while
    # keeping >=2 steps on the "parallel" axis when the batch allows it (v7x has 2 TCs).
    candidates = [tb for tb in range(1, B + 1)
                  if B % tb == 0 and (tb == B or (tb * S) % 8 == 0)]
    good = [tb for tb in candidates if tb * S >= 256]
    tb = min(good) if good else max(candidates)
    nb = B // tb

    # Weights streamed to the kernel in bf16 (native MXU operand dtype; halves HBM
    # traffic and VMEM residency).  Biases / LN params / residual stay f32.
    wqkv = params["wqkv"].astype(jnp.bfloat16)
    wo = params["wo"].astype(jnp.bfloat16)
    w1 = params["w1"].astype(jnp.bfloat16)
    w2 = params["w2"].astype(jnp.bfloat16)

    x2 = x.reshape(B * S, D)                # 2-D activation slab; blocks are (TB*S, D)

    def wspec(shape):                       # per-layer weight: only layer `l` resident
        nd = len(shape) - 1
        return pl.BlockSpec((1,) + shape[1:], lambda b, l: (l,) + (0,) * nd)

    def cspec(shape):                       # grid-invariant (final-norm) params
        nd = len(shape)
        return pl.BlockSpec(shape, lambda b, l: (0,) * nd)

    kernel = functools.partial(_encoder_kernel, n_heads=n_heads, seq=S, eps=eps)
    out = pl.pallas_call(
        kernel,
        out_shape=jax.ShapeDtypeStruct((B * S, D), x.dtype),
        grid=(nb, L),                       # batch tiles outer ("parallel"), layers inner
        in_specs=[
            pl.BlockSpec((tb * S, D), lambda b, l: (b, 0)),   # x: resident across l
            wspec(wqkv.shape),              # (1, D, 3D)  fused Wq|Wk|Wv   (bf16)
            wspec(params["bqkv"].shape),    # (1, 1, 3D)
            wspec(wo.shape),                # (1, D, D)                    (bf16)
            wspec(params["bo"].shape),      # (1, 1, D)
            wspec(params["ln0a"].shape),    # (1, 1, D)
            wspec(params["ln0b"].shape),
            wspec(params["ln1a"].shape),
            wspec(params["ln1b"].shape),
            wspec(w1.shape),                # (1, D, d_ff)                 (bf16)
            wspec(params["b1"].shape),      # (1, 1, d_ff)
            wspec(w2.shape),                # (1, d_ff, D)                 (bf16)
            wspec(params["b2"].shape),      # (1, 1, D)
            cspec(params["norm_a"].shape),  # (1, D)
            cspec(params["norm_b"].shape),  # (1, D)
        ],
        out_specs=pl.BlockSpec((tb * S, D), lambda b, l: (b, 0)),
        scratch_shapes=[pltpu.VMEM((tb * S, D), jnp.float32)],  # residual carry across l
        compiler_params=pltpu.CompilerParams(
            dimension_semantics=("parallel", "arbitrary"),
            vmem_limit_bytes=32 * 1024 * 1024),
    )(x2, wqkv, params["bqkv"], wo, params["bo"],
      params["ln0a"], params["ln0b"], params["ln1a"], params["ln1b"],
      w1, params["b1"], w2, params["b2"],
      params["norm_a"], params["norm_b"])
    return out.reshape(B, S, D)


# ----------------------------------------------------------------------------- params

def init_params(key, n_layers, d_model, d_ff):
    def lin(k, fan_in, fan_out):
        kw, kb = jax.random.split(k)
        w = 0.05 * jax.random.normal(kw, (fan_in, fan_out), jnp.float32)
        b = 0.05 * jax.random.normal(kb, (1, fan_out), jnp.float32)
        return w, b

    wqkv, bqkv, wo, bo, w1, b1, w2, b2 = ([] for _ in range(8))
    for _ in range(n_layers):
        key, kq, kk, kv, ko, k1, k2 = jax.random.split(key, 7)
        wq_, bq_ = lin(kq, d_model, d_model)
        wk_, bk_ = lin(kk, d_model, d_model)
        wv_, bv_ = lin(kv, d_model, d_model)
        wo_, bo_ = lin(ko, d_model, d_model)
        w1_, b1_ = lin(k1, d_model, d_ff)
        w2_, b2_ = lin(k2, d_ff, d_model)
        wqkv.append(jnp.concatenate([wq_, wk_, wv_], axis=1))
        bqkv.append(jnp.concatenate([bq_, bk_, bv_], axis=1))
        wo.append(wo_); bo.append(bo_)
        w1.append(w1_); b1.append(b1_)
        w2.append(w2_); b2.append(b2_)

    ones = jnp.ones((n_layers, 1, d_model), jnp.float32)
    zeros = jnp.zeros((n_layers, 1, d_model), jnp.float32)
    return dict(
        wqkv=jnp.stack(wqkv), bqkv=jnp.stack(bqkv),
        wo=jnp.stack(wo), bo=jnp.stack(bo),
        ln0a=ones, ln0b=zeros, ln1a=ones, ln1b=zeros,
        w1=jnp.stack(w1), b1=jnp.stack(b1),
        w2=jnp.stack(w2), b2=jnp.stack(b2),
        norm_a=jnp.ones((1, d_model), jnp.float32),
        norm_b=jnp.zeros((1, d_model), jnp.float32),
    )


# ----------------------------------------------------------------------------- reference

def encoder_reference(x, params, n_heads, eps=1e-6):
    B, S, D = x.shape
    d_k = D // n_heads

    def layer_norm(v, a, b):
        mean = jnp.mean(v, axis=-1, keepdims=True)
        diff = v - mean
        var = jnp.sum(diff * diff, axis=-1, keepdims=True) / (D - 1)
        return a * diff / (jnp.sqrt(var) + eps) + b

    L = params["wqkv"].shape[0]
    for l in range(L):
        xn = layer_norm(x, params["ln0a"][l], params["ln0b"][l])
        qkv = xn @ params["wqkv"][l] + params["bqkv"][l]
        q, k, v = jnp.split(qkv, 3, axis=-1)
        q = q.reshape(B, S, n_heads, d_k).transpose(0, 2, 1, 3)
        k = k.reshape(B, S, n_heads, d_k).transpose(0, 2, 1, 3)
        v = v.reshape(B, S, n_heads, d_k).transpose(0, 2, 1, 3)
        s = jnp.einsum("bhqd,bhkd->bhqk", q, k) / math.sqrt(d_k)
        p = jax.nn.softmax(s, axis=-1)
        attn = jnp.einsum("bhqk,bhkd->bhqd", p, v)
        attn = attn.transpose(0, 2, 1, 3).reshape(B, S, D)
        x = x + attn @ params["wo"][l] + params["bo"][l]
        xn = layer_norm(x, params["ln1a"][l], params["ln1b"][l])
        h = jnp.maximum(xn @ params["w1"][l] + params["b1"][l], 0.0)
        x = x + h @ params["w2"][l] + params["b2"][l]
    return layer_norm(x, params["norm_a"], params["norm_b"])


# ----------------------------------------------------------------------------- main

if __name__ == "__main__":
    B, S, D = 2, 8, 32          # batch, seq(points), d_model (= layer.size)
    N_LAYERS, N_HEADS, D_FF = 2, 4, 64

    key = jax.random.PRNGKey(0)
    kx, kp = jax.random.split(key)
    x = jax.random.normal(kx, (B, S, D), jnp.float32)
    params = init_params(kp, N_LAYERS, D, D_FF)

    fwd = jax.jit(functools.partial(encoder_forward, n_heads=N_HEADS))
    out = jax.block_until_ready(fwd(x, None, params))
    assert out.shape == (B, S, D) and out.dtype == jnp.float32

    ref = encoder_reference(x, params, N_HEADS)
    err = float(jnp.max(jnp.abs(out - ref)))
    # bf16 MXU operands + approx reciprocals vs the f32 reference -> looser tolerance
    assert err < 5e-2, f"max abs err {err}"
    print("KERNEL_OK")
</pallas_src>

<mosaic_0001>
module attributes {stable_mosaic.version = 11 : i64} {
  func.func @_encoder_kernel(%arg0: i32, %arg1: i32, %arg2: memref<16x32xf32, #tpu.memory_space<vmem>>, %arg3: memref<1x32x96xbf16, #tpu.memory_space<vmem>>, %arg4: memref<1x1x96xf32, #tpu.memory_space<vmem>>, %arg5: memref<1x32x32xbf16, #tpu.memory_space<vmem>>, %arg6: memref<1x1x32xf32, #tpu.memory_space<vmem>>, %arg7: memref<1x1x32xf32, #tpu.memory_space<vmem>>, %arg8: memref<1x1x32xf32, #tpu.memory_space<vmem>>, %arg9: memref<1x1x32xf32, #tpu.memory_space<vmem>>, %arg10: memref<1x1x32xf32, #tpu.memory_space<vmem>>, %arg11: memref<1x32x64xbf16, #tpu.memory_space<vmem>>, %arg12: memref<1x1x64xf32, #tpu.memory_space<vmem>>, %arg13: memref<1x64x32xbf16, #tpu.memory_space<vmem>>, %arg14: memref<1x1x32xf32, #tpu.memory_space<vmem>>, %arg15: memref<1x32xf32, #tpu.memory_space<vmem>>, %arg16: memref<1x32xf32, #tpu.memory_space<vmem>>, %arg17: memref<16x32xf32, #tpu.memory_space<vmem>>, %arg18: memref<16x32xf32, #tpu.memory_space<vmem>>) attributes {dimension_semantics = [#tpu.dimension_semantics<parallel>, #tpu.dimension_semantics<arbitrary>], iteration_bounds = array<i64: 1, 2>, scalar_prefetch = 0 : i64, scratch_operands = 1 : i64, tpu.core_type = #tpu.core_type<tc>, window_params = [{transform_indices = @transform_0, window_bounds = array<i64: 16, 32>}, {transform_indices = @transform_1, window_bounds = array<i64: 1, 32, 96>}, {transform_indices = @transform_2, window_bounds = array<i64: 1, 1, 96>}, {transform_indices = @transform_3, window_bounds = array<i64: 1, 32, 32>}, {transform_indices = @transform_4, window_bounds = array<i64: 1, 1, 32>}, {transform_indices = @transform_5, window_bounds = array<i64: 1, 1, 32>}, {transform_indices = @transform_6, window_bounds = array<i64: 1, 1, 32>}, {transform_indices = @transform_7, window_bounds = array<i64: 1, 1, 32>}, {transform_indices = @transform_8, window_bounds = array<i64: 1, 1, 32>}, {transform_indices = @transform_9, window_bounds = array<i64: 1, 32, 64>}, {transform_indices = @transform_10, window_bounds = array<i64: 1, 1, 64>}, {transform_indices = @transform_11, window_bounds = array<i64: 1, 64, 32>}, {transform_indices = @transform_12, window_bounds = array<i64: 1, 1, 32>}, {pipeline_mode = #tpu.pipeline_mode<synchronous>, transform_indices = @transform_13, window_bounds = array<i64: 1, 32>}, {pipeline_mode = #tpu.pipeline_mode<synchronous>, transform_indices = @transform_14, window_bounds = array<i64: 1, 32>}, {transform_indices = @transform_15, window_bounds = array<i64: 16, 32>}]} {
    %c0_i32 = arith.constant 0 : i32
    %0 = arith.cmpi eq, %arg1, %c0_i32 : i32
    %1 = arith.extui %0 : i1 to i32
    %c0_i32_0 = arith.constant 0 : i32
    %2 = arith.cmpi ne, %1, %c0_i32_0 : i32
    scf.if %2 {
      %c0_79 = arith.constant 0 : index
      %c0_80 = arith.constant 0 : index
      %190 = vector.load %arg2[%c0_79, %c0_80] : memref<16x32xf32, #tpu.memory_space<vmem>>, vector<16x32xf32>
      %c0_81 = arith.constant 0 : index
      %c0_82 = arith.constant 0 : index
      %191 = vector.load %arg18[%c0_81, %c0_82] : memref<16x32xf32, #tpu.memory_space<vmem>>, vector<16x32xf32>
      tpu.vector_store %arg18[%c0_81, %c0_82], %190 {strides = array<i32>} : memref<16x32xf32, #tpu.memory_space<vmem>>, vector<16x32xf32>,
    } else {
    }
    %c0 = arith.constant 0 : index
    %c0_1 = arith.constant 0 : index
    %3 = vector.load %arg18[%c0, %c0_1] : memref<16x32xf32, #tpu.memory_space<vmem>>, vector<16x32xf32>
    %c0_2 = arith.constant 0 : index
    %c0_3 = arith.constant 0 : index
    %c0_4 = arith.constant 0 : index
    %4 = vector.load %arg7[%c0_2, %c0_3, %c0_4] : memref<1x1x32xf32, #tpu.memory_space<vmem>>, vector<1x1x32xf32>
    %5 = vector.shape_cast %4 : vector<1x1x32xf32> to vector<1x32xf32>
    %c0_5 = arith.constant 0 : index
    %c0_6 = arith.constant 0 : index
    %c0_7 = arith.constant 0 : index
    %6 = vector.load %arg8[%c0_5, %c0_6, %c0_7] : memref<1x1x32xf32, #tpu.memory_space<vmem>>, vector<1x1x32xf32>
    %7 = vector.shape_cast %6 : vector<1x1x32xf32> to vector<1x32xf32>
    %cst = arith.constant dense<0.000000e+00> : vector<16xf32>
    %8 = vector.multi_reduction <add>, %3, %cst [1] : vector<16x32xf32> to vector<16xf32>
    %9 = vector.shape_cast %8 : vector<16xf32> to vector<16x1xf32>
    %cst_8 = arith.constant 3.200000e+01 : f32
    %10 = vector.broadcast %cst_8 : f32 to vector<16x1xf32>
    %11 = arith.divf %9, %10 : vector<16x1xf32>
    %12 = vector.broadcast %11 : vector<16x1xf32> to vector<16x32xf32>
    %13 = arith.subf %3, %12 : vector<16x32xf32>
    %14 = arith.mulf %13, %13 : vector<16x32xf32>
    %cst_9 = arith.constant dense<0.000000e+00> : vector<16xf32>
    %15 = vector.multi_reduction <add>, %14, %cst_9 [1] : vector<16x32xf32> to vector<16xf32>
    %16 = vector.shape_cast %15 : vector<16xf32> to vector<16x1xf32>
    %cst_10 = arith.constant 0.0322580636 : f32
    %17 = vector.broadcast %cst_10 : f32 to vector<16x1xf32>
    %18 = arith.mulf %16, %17 : vector<16x1xf32>
    %19 = math.sqrt %18 : vector<16x1xf32>
    %cst_11 = arith.constant 9.99999997E-7 : f32
    %20 = vector.broadcast %cst_11 : f32 to vector<16x1xf32>
    %21 = arith.addf %19, %20 : vector<16x1xf32>
    %22 = tpu.reciprocal %21 {approx = true} : vector<16x1xf32> -> vector<16x1xf32>
    %23 = vector.broadcast %22 : vector<16x1xf32> to vector<16x32xf32>
    %24 = arith.mulf %13, %23 : vector<16x32xf32>
    %25 = vector.broadcast %5 : vector<1x32xf32> to vector<16x32xf32>
    %26 = arith.mulf %25, %24 : vector<16x32xf32>
    %27 = vector.broadcast %7 : vector<1x32xf32> to vector<16x32xf32>
    %28 = arith.addf %26, %27 : vector<16x32xf32>
    %29 = arith.truncf %28 : vector<16x32xf32> to vector<16x32xbf16>
    %c0_12 = arith.constant 0 : index
    %c0_13 = arith.constant 0 : index
    %c0_14 = arith.constant 0 : index
    %30 = vector.load %arg3[%c0_12, %c0_13, %c0_14] : memref<1x32x96xbf16, #tpu.memory_space<vmem>>, vector<1x32x96xbf16>
    %31 = vector.shape_cast %30 : vector<1x32x96xbf16> to vector<32x96xbf16>
    %cst_15 = arith.constant dense<0.000000e+00> : vector<16x96xf32>
    %32 = tpu.matmul %29, %31, %cst_15 {dimension_numbers = #tpu.dot_dimension_numbers<[1], [0], [0], [1], [0, 0, 1, 1], [], []>} : vector<16x32xbf16>, vector<32x96xbf16>, vector<16x96xf32> -> vector<16x96xf32>
    %c0_16 = arith.constant 0 : index
    %c0_17 = arith.constant 0 : index
    %c0_18 = arith.constant 0 : index
    %33 = vector.load %arg4[%c0_16, %c0_17, %c0_18] : memref<1x1x96xf32, #tpu.memory_space<vmem>>, vector<1x1x96xf32>
    %34 = vector.shape_cast %33 : vector<1x1x96xf32> to vector<1x96xf32>
    %35 = vector.broadcast %34 : vector<1x96xf32> to vector<16x96xf32>
    %36 = arith.addf %32, %35 : vector<16x96xf32>
    %37 = vector.shape_cast %36 : vector<16x96xf32> to vector<2x8x96xf32>
    %38 = arith.truncf %37 : vector<2x8x96xf32> to vector<2x8x96xbf16>
    %39 = vector.extract_strided_slice %38 {offsets = [0, 0, 0], sizes = [2, 8, 32], strides = [1, 1, 1]} : vector<2x8x96xbf16> to vector<2x8x32xbf16>
    %40 = vector.extract_strided_slice %38 {offsets = [0, 0, 32], sizes = [2, 8, 32], strides = [1, 1, 1]} : vector<2x8x96xbf16> to vector<2x8x32xbf16>
    %41 = vector.extract_strided_slice %38 {offsets = [0, 0, 64], sizes = [2, 8, 32], strides = [1, 1, 1]} : vector<2x8x96xbf16> to vector<2x8x32xbf16>
    %c0_19 = arith.constant 0 : index
    %c0_20 = arith.constant 0 : index
    %c0_21 = arith.constant 0 : index
    %42 = vector.load %arg5[%c0_19, %c0_20, %c0_21] : memref<1x32x32xbf16, #tpu.memory_space<vmem>>, vector<1x32x32xbf16>
    %43 = vector.shape_cast %42 : vector<1x32x32xbf16> to vector<32x32xbf16>
    %cst_22 = arith.constant 0.000000e+00 : f32
    %44 = vector.broadcast %cst_22 : f32 to vector<16x32xf32>
    %45 = vector.extract_strided_slice %39 {offsets = [0, 0, 0], sizes = [2, 8, 8], strides = [1, 1, 1]} : vector<2x8x32xbf16> to vector<2x8x8xbf16>
    %46 = vector.extract_strided_slice %40 {offsets = [0, 0, 0], sizes = [2, 8, 8], strides = [1, 1, 1]} : vector<2x8x32xbf16> to vector<2x8x8xbf16>
    %47 = vector.extract_strided_slice %41 {offsets = [0, 0, 0], sizes = [2, 8, 8], strides = [1, 1, 1]} : vector<2x8x32xbf16> to vector<2x8x8xbf16>
    "tpu.trace_start"() <{level = 10 : i32, message = "bqd,bkd->bqk"}> : () -> ()
    %cst_23 = arith.constant dense<0.000000e+00> : vector<2x8x8xf32>
    %48 = tpu.matmul %45, %46, %cst_23 {dimension_numbers = #tpu.dot_dimension_numbers<[2], [2], [1], [1], [0, 0, 0, 1, 1, 1], [0], [0]>} : vector<2x8x8xbf16>, vector<2x8x8xbf16>, vector<2x8x8xf32> -> vector<2x8x8xf32>
    "tpu.trace_stop"() : () -> ()
    %cst_24 = arith.constant 0.353553385 : f32
    %49 = vector.broadcast %cst_24 : f32 to vector<2x8x8xf32>
    %50 = arith.mulf %48, %49 : vector<2x8x8xf32>
    %cst_25 = arith.constant dense<0xFF800000> : vector<2x8xf32>
    %51 = vector.multi_reduction <maximumf>, %50, %cst_25 [2] : vector<2x8x8xf32> to vector<2x8xf32>
    %52 = vector.shape_cast %51 : vector<2x8xf32> to vector<2x8x1xf32>
    %53 = vector.broadcast %52 : vector<2x8x1xf32> to vector<2x8x8xf32>
    %54 = arith.subf %50, %53 : vector<2x8x8xf32>
    %55 = math.exp %54 : vector<2x8x8xf32>
    %cst_26 = arith.constant dense<0.000000e+00> : vector<2x8xf32>
    %56 = vector.multi_reduction <add>, %55, %cst_26 [2] : vector<2x8x8xf32> to vector<2x8xf32>
    %57 = vector.shape_cast %56 : vector<2x8xf32> to vector<2x8x1xf32>
    %58 = tpu.reciprocal %57 {approx = true} : vector<2x8x1xf32> -> vector<2x8x1xf32>
    %59 = vector.broadcast %58 : vector<2x8x1xf32> to vector<2x8x8xf32>
    %60 = arith.mulf %55, %59 : vector<2x8x8xf32>
    %61 = arith.truncf %60 : vector<2x8x8xf32> to vector<2x8x8xbf16>
    "tpu.trace_start"() <{level = 10 : i32, message = "bqk,bkd->bqd"}> : () -> ()
    %cst_27 = arith.constant dense<0.000000e+00> : vector<2x8x8xf32>
    %62 = tpu.matmul %61, %47, %cst_27 {dimension_numbers = #tpu.dot_dimension_numbers<[2], [1], [1], [2], [0, 0, 0, 1, 1, 2], [0], [0]>} : vector<2x8x8xbf16>, vector<2x8x8xbf16>, vector<2x8x8xf32> -> vector<2x8x8xf32>
    "tpu.trace_stop"() : () -> ()
    %63 = vector.shape_cast %62 : vector<2x8x8xf32> to vector<16x8xf32>
    %64 = arith.truncf %63 : vector<16x8xf32> to vector<16x8xbf16>
    %65 = vector.extract_strided_slice %43 {offsets = [0, 0], sizes = [8, 32], strides = [1, 1]} : vector<32x32xbf16> to vector<8x32xbf16>
    %cst_28 = arith.constant dense<0.000000e+00> : vector<16x32xf32>
    %66 = tpu.matmul %64, %65, %cst_28 {dimension_numbers = #tpu.dot_dimension_numbers<[1], [0], [0], [1], [0, 0, 1, 1], [], []>} : vector<16x8xbf16>, vector<8x32xbf16>, vector<16x32xf32> -> vector<16x32xf32>
    %67 = arith.addf %44, %66 : vector<16x32xf32>
    %68 = vector.extract_strided_slice %39 {offsets = [0, 0, 8], sizes = [2, 8, 8], strides = [1, 1, 1]} : vector<2x8x32xbf16> to vector<2x8x8xbf16>
    %69 = vector.extract_strided_slice %40 {offsets = [0, 0, 8], sizes = [2, 8, 8], strides = [1, 1, 1]} : vector<2x8x32xbf16> to vector<2x8x8xbf16>
    %70 = vector.extract_strided_slice %41 {offsets = [0, 0, 8], sizes = [2, 8, 8], strides = [1, 1, 1]} : vector<2x8x32xbf16> to vector<2x8x8xbf16>
    "tpu.trace_start"() <{level = 10 : i32, message = "bqd,bkd->bqk"}> : () -> ()
    %cst_29 = arith.constant dense<0.000000e+00> : vector<2x8x8xf32>
    %71 = tpu.matmul %68, %69, %cst_29 {dimension_numbers = #tpu.dot_dimension_numbers<[2], [2], [1], [1], [0, 0, 0, 1, 1, 1], [0], [0]>} : vector<2x8x8xbf16>, vector<2x8x8xbf16>, vector<2x8x8xf32> -> vector<2x8x8xf32>
    "tpu.trace_stop"() : () -> ()
    %cst_30 = arith.constant 0.353553385 : f32
    %72 = vector.broadcast %cst_30 : f32 to vector<2x8x8xf32>
    %73 = arith.mulf %71, %72 : vector<2x8x8xf32>
    %cst_31 = arith.constant dense<0xFF800000> : vector<2x8xf32>
    %74 = vector.multi_reduction <maximumf>, %73, %cst_31 [2] : vector<2x8x8xf32> to vector<2x8xf32>
    %75 = vector.shape_cast %74 : vector<2x8xf32> to vector<2x8x1xf32>
    %76 = vector.broadcast %75 : vector<2x8x1xf32> to vector<2x8x8xf32>
    %77 = arith.subf %73, %76 : vector<2x8x8xf32>
    %78 = math.exp %77 : vector<2x8x8xf32>
    %cst_32 = arith.constant dense<0.000000e+00> : vector<2x8xf32>
    %79 = vector.multi_reduction <add>, %78, %cst_32 [2] : vector<2x8x8xf32> to vector<2x8xf32>
    %80 = vector.shape_cast %79 : vector<2x8xf32> to vector<2x8x1xf32>
    %81 = tpu.reciprocal %80 {approx = true} : vector<2x8x1xf32> -> vector<2x8x1xf32>
    %82 = vector.broadcast %81 : vector<2x8x1xf32> to vector<2x8x8xf32>
    %83 = arith.mulf %78, %82 : vector<2x8x8xf32>
    %84 = arith.truncf %83 : vector<2x8x8xf32> to vector<2x8x8xbf16>
    "tpu.trace_start"() <{level = 10 : i32, message = "bqk,bkd->bqd"}> : () -> ()
    %cst_33 = arith.constant dense<0.000000e+00> : vector<2x8x8xf32>
    %85 = tpu.matmul %84, %70, %cst_33 {dimension_numbers = #tpu.dot_dimension_numbers<[2], [1], [1], [2], [0, 0, 0, 1, 1, 2], [0], [0]>} : vector<2x8x8xbf16>, vector<2x8x8xbf16>, vector<2x8x8xf32> -> vector<2x8x8xf32>
    "tpu.trace_stop"() : () -> ()
    %86 = vector.shape_cast %85 : vector<2x8x8xf32> to vector<16x8xf32>
    %87 = arith.truncf %86 : vector<16x8xf32> to vector<16x8xbf16>
    %88 = vector.extract_strided_slice %43 {offsets = [8, 0], sizes = [8, 32], strides = [1, 1]} : vector<32x32xbf16> to vector<8x32xbf16>
    %cst_34 = arith.constant dense<0.000000e+00> : vector<16x32xf32>
    %89 = tpu.matmul %87, %88, %cst_34 {dimension_numbers = #tpu.dot_dimension_numbers<[1], [0], [0], [1], [0, 0, 1, 1], [], []>} : vector<16x8xbf16>, vector<8x32xbf16>, vector<16x32xf32> -> vector<16x32xf32>
    %90 = arith.addf %67, %89 : vector<16x32xf32>
    %91 = vector.extract_strided_slice %39 {offsets = [0, 0, 16], sizes = [2, 8, 8], strides = [1, 1, 1]} : vector<2x8x32xbf16> to vector<2x8x8xbf16>
    %92 = vector.extract_strided_slice %40 {offsets = [0, 0, 16], sizes = [2, 8, 8], strides = [1, 1, 1]} : vector<2x8x32xbf16> to vector<2x8x8xbf16>
    %93 = vector.extract_strided_slice %41 {offsets = [0, 0, 16], sizes = [2, 8, 8], strides = [1, 1, 1]} : vector<2x8x32xbf16> to vector<2x8x8xbf16>
    "tpu.trace_start"() <{level = 10 : i32, message = "bqd,bkd->bqk"}> : () -> ()
    %cst_35 = arith.constant dense<0.000000e+00> : vector<2x8x8xf32>
    %94 = tpu.matmul %91, %92, %cst_35 {dimension_numbers = #tpu.dot_dimension_numbers<[2], [2], [1], [1], [0, 0, 0, 1, 1, 1], [0], [0]>} : vector<2x8x8xbf16>, vector<2x8x8xbf16>, vector<2x8x8xf32> -> vector<2x8x8xf32>
    "tpu.trace_stop"() : () -> ()
    %cst_36 = arith.constant 0.353553385 : f32
    %95 = vector.broadcast %cst_36 : f32 to vector<2x8x8xf32>
    %96 = arith.mulf %94, %95 : vector<2x8x8xf32>
    %cst_37 = arith.constant dense<0xFF800000> : vector<2x8xf32>
    %97 = vector.multi_reduction <maximumf>, %96, %cst_37 [2] : vector<2x8x8xf32> to vector<2x8xf32>
    %98 = vector.shape_cast %97 : vector<2x8xf32> to vector<2x8x1xf32>
    %99 = vector.broadcast %98 : vector<2x8x1xf32> to vector<2x8x8xf32>
    %100 = arith.subf %96, %99 : vector<2x8x8xf32>
    %101 = math.exp %100 : vector<2x8x8xf32>
    %cst_38 = arith.constant dense<0.000000e+00> : vector<2x8xf32>
    %102 = vector.multi_reduction <add>, %101, %cst_38 [2] : vector<2x8x8xf32> to vector<2x8xf32>
    %103 = vector.shape_cast %102 : vector<2x8xf32> to vector<2x8x1xf32>
    %104 = tpu.reciprocal %103 {approx = true} : vector<2x8x1xf32> -> vector<2x8x1xf32>
    %105 = vector.broadcast %104 : vector<2x8x1xf32> to vector<2x8x8xf32>
    %106 = arith.mulf %101, %105 : vector<2x8x8xf32>
    %107 = arith.truncf %106 : vector<2x8x8xf32> to vector<2x8x8xbf16>
    "tpu.trace_start"() <{level = 10 : i32, message = "bqk,bkd->bqd"}> : () -> ()
    %cst_39 = arith.constant dense<0.000000e+00> : vector<2x8x8xf32>
    %108 = tpu.matmul %107, %93, %cst_39 {dimension_numbers = #tpu.dot_dimension_numbers<[2], [1], [1], [2], [0, 0, 0, 1, 1, 2], [0], [0]>} : vector<2x8x8xbf16>, vector<2x8x8xbf16>, vector<2x8x8xf32> -> vector<2x8x8xf32>
    "tpu.trace_stop"() : () -> ()
    %109 = vector.shape_cast %108 : vector<2x8x8xf32> to vector<16x8xf32>
    %110 = arith.truncf %109 : vector<16x8xf32> to vector<16x8xbf16>
    %111 = vector.extract_strided_slice %43 {offsets = [16, 0], sizes = [8, 32], strides = [1, 1]} : vector<32x32xbf16> to vector<8x32xbf16>
    %cst_40 = arith.constant dense<0.000000e+00> : vector<16x32xf32>
    %112 = tpu.matmul %110, %111, %cst_40 {dimension_numbers = #tpu.dot_dimension_numbers<[1], [0], [0], [1], [0, 0, 1, 1], [], []>} : vector<16x8xbf16>, vector<8x32xbf16>, vector<16x32xf32> -> vector<16x32xf32>
    %113 = arith.addf %90, %112 : vector<16x32xf32>
    %114 = vector.extract_strided_slice %39 {offsets = [0, 0, 24], sizes = [2, 8, 8], strides = [1, 1, 1]} : vector<2x8x32xbf16> to vector<2x8x8xbf16>
    %115 = vector.extract_strided_slice %40 {offsets = [0, 0, 24], sizes = [2, 8, 8], strides = [1, 1, 1]} : vector<2x8x32xbf16> to vector<2x8x8xbf16>
    %116 = vector.extract_strided_slice %41 {offsets = [0, 0, 24], sizes = [2, 8, 8], strides = [1, 1, 1]} : vector<2x8x32xbf16> to vector<2x8x8xbf16>
    "tpu.trace_start"() <{level = 10 : i32, message = "bqd,bkd->bqk"}> : () -> ()
    %cst_41 = arith.constant dense<0.000000e+00> : vector<2x8x8xf32>
    %117 = tpu.matmul %114, %115, %cst_41 {dimension_numbers = #tpu.dot_dimension_numbers<[2], [2], [1], [1], [0, 0, 0, 1, 1, 1], [0], [0]>} : vector<2x8x8xbf16>, vector<2x8x8xbf16>, vector<2x8x8xf32> -> vector<2x8x8xf32>
    "tpu.trace_stop"() : () -> ()
    %cst_42 = arith.constant 0.353553385 : f32
    %118 = vector.broadcast %cst_42 : f32 to vector<2x8x8xf32>
    %119 = arith.mulf %117, %118 : vector<2x8x8xf32>
    %cst_43 = arith.constant dense<0xFF800000> : vector<2x8xf32>
    %120 = vector.multi_reduction <maximumf>, %119, %cst_43 [2] : vector<2x8x8xf32> to vector<2x8xf32>
    %121 = vector.shape_cast %120 : vector<2x8xf32> to vector<2x8x1xf32>
    %122 = vector.broadcast %121 : vector<2x8x1xf32> to vector<2x8x8xf32>
    %123 = arith.subf %119, %122 : vector<2x8x8xf32>
    %124 = math.exp %123 : vector<2x8x8xf32>
    %cst_44 = arith.constant dense<0.000000e+00> : vector<2x8xf32>
    %125 = vector.multi_reduction <add>, %124, %cst_44 [2] : vector<2x8x8xf32> to vector<2x8xf32>
    %126 = vector.shape_cast %125 : vector<2x8xf32> to vector<2x8x1xf32>
    %127 = tpu.reciprocal %126 {approx = true} : vector<2x8x1xf32> -> vector<2x8x1xf32>
    %128 = vector.broadcast %127 : vector<2x8x1xf32> to vector<2x8x8xf32>
    %129 = arith.mulf %124, %128 : vector<2x8x8xf32>
    %130 = arith.truncf %129 : vector<2x8x8xf32> to vector<2x8x8xbf16>
    "tpu.trace_start"() <{level = 10 : i32, message = "bqk,bkd->bqd"}> : () -> ()
    %cst_45 = arith.constant dense<0.000000e+00> : vector<2x8x8xf32>
    %131 = tpu.matmul %130, %116, %cst_45 {dimension_numbers = #tpu.dot_dimension_numbers<[2], [1], [1], [2], [0, 0, 0, 1, 1, 2], [0], [0]>} : vector<2x8x8xbf16>, vector<2x8x8xbf16>, vector<2x8x8xf32> -> vector<2x8x8xf32>
    "tpu.trace_stop"() : () -> ()
    %132 = vector.shape_cast %131 : vector<2x8x8xf32> to vector<16x8xf32>
    %133 = arith.truncf %132 : vector<16x8xf32> to vector<16x8xbf16>
    %134 = vector.extract_strided_slice %43 {offsets = [24, 0], sizes = [8, 32], strides = [1, 1]} : vector<32x32xbf16> to vector<8x32xbf16>
    %cst_46 = arith.constant dense<0.000000e+00> : vector<16x32xf32>
    %135 = tpu.matmul %133, %134, %cst_46 {dimension_numbers = #tpu.dot_dimension_numbers<[1], [0], [0], [1], [0, 0, 1, 1], [], []>} : vector<16x8xbf16>, vector<8x32xbf16>, vector<16x32xf32> -> vector<16x32xf32>
    %136 = arith.addf %113, %135 : vector<16x32xf32>
    %137 = arith.addf %3, %136 : vector<16x32xf32>
    %c0_47 = arith.constant 0 : index
    %c0_48 = arith.constant 0 : index
    %c0_49 = arith.constant 0 : index
    %138 = vector.load %arg6[%c0_47, %c0_48, %c0_49] : memref<1x1x32xf32, #tpu.memory_space<vmem>>, vector<1x1x32xf32>
    %139 = vector.shape_cast %138 : vector<1x1x32xf32> to vector<1x32xf32>
    %140 = vector.broadcast %139 : vector<1x32xf32> to vector<16x32xf32>
    %141 = arith.addf %137, %140 : vector<16x32xf32>
    %c0_50 = arith.constant 0 : index
    %c0_51 = arith.constant 0 : index
    %c0_52 = arith.constant 0 : index
    %142 = vector.load %arg9[%c0_50, %c0_51, %c0_52] : memref<1x1x32xf32, #tpu.memory_space<vmem>>, vector<1x1x32xf32>
    %143 = vector.shape_cast %142 : vector<1x1x32xf32> to vector<1x32xf32>
    %c0_53 = arith.constant 0 : index
    %c0_54 = arith.constant 0 : index
    %c0_55 = arith.constant 0 : index
    %144 = vector.load %arg10[%c0_53, %c0_54, %c0_55] : memref<1x1x32xf32, #tpu.memory_space<vmem>>, vector<1x1x32xf32>
    %145 = vector.shape_cast %144 : vector<1x1x32xf32> to vector<1x32xf32>
    %cst_56 = arith.constant dense<0.000000e+00> : vector<16xf32>
    %146 = vector.multi_reduction <add>, %141, %cst_56 [1] : vector<16x32xf32> to vector<16xf32>
    %147 = vector.shape_cast %146 : vector<16xf32> to vector<16x1xf32>
    %cst_57 = arith.constant 3.200000e+01 : f32
    %148 = vector.broadcast %cst_57 : f32 to vector<16x1xf32>
    %149 = arith.divf %147, %148 : vector<16x1xf32>
    %150 = vector.broadcast %149 : vector<16x1xf32> to vector<16x32xf32>
    %151 = arith.subf %141, %150 : vector<16x32xf32>
    %152 = arith.mulf %151, %151 : vector<16x32xf32>
    %cst_58 = arith.constant dense<0.000000e+00> : vector<16xf32>
    %153 = vector.multi_reduction <add>, %152, %cst_58 [1] : vector<16x32xf32> to vector<16xf32>
    %154 = vector.shape_cast %153 : vector<16xf32> to vector<16x1xf32>
    %cst_59 = arith.constant 0.0322580636 : f32
    %155 = vector.broadcast %cst_59 : f32 to vector<16x1xf32>
    %156 = arith.mulf %154, %155 : vector<16x1xf32>
    %157 = math.sqrt %156 : vector<16x1xf32>
    %cst_60 = arith.constant 9.99999997E-7 : f32
    %158 = vector.broadcast %cst_60 : f32 to vector<16x1xf32>
    %159 = arith.addf %157, %158 : vector<16x1xf32>
    %160 = tpu.reciprocal %159 {approx = true} : vector<16x1xf32> -> vector<16x1xf32>
    %161 = vector.broadcast %160 : vector<16x1xf32> to vector<16x32xf32>
    %162 = arith.mulf %151, %161 : vector<16x32xf32>
    %163 = vector.broadcast %143 : vector<1x32xf32> to vector<16x32xf32>
    %164 = arith.mulf %163, %162 : vector<16x32xf32>
    %165 = vector.broadcast %145 : vector<1x32xf32> to vector<16x32xf32>
    %166 = arith.addf %164, %165 : vector<16x32xf32>
    %167 = arith.truncf %166 : vector<16x32xf32> to vector<16x32xbf16>
    %c0_61 = arith.constant 0 : index
    %c0_62 = arith.constant 0 : index
    %c0_63 = arith.constant 0 : index
    %168 = vector.load %arg11[%c0_61, %c0_62, %c0_63] : memref<1x32x64xbf16, #tpu.memory_space<vmem>>, vector<1x32x64xbf16>
    %169 = vector.shape_cast %168 : vector<1x32x64xbf16> to vector<32x64xbf16>
    %cst_64 = arith.constant dense<0.000000e+00> : vector<16x64xf32>
    %170 = tpu.matmul %167, %169, %cst_64 {dimension_numbers = #tpu.dot_dimension_numbers<[1], [0], [0], [1], [0, 0, 1, 1], [], []>} : vector<16x32xbf16>, vector<32x64xbf16>, vector<16x64xf32> -> vector<16x64xf32>
    %c0_65 = arith.constant 0 : index
    %c0_66 = arith.constant 0 : index
    %c0_67 = arith.constant 0 : index
    %171 = vector.load %arg12[%c0_65, %c0_66, %c0_67] : memref<1x1x64xf32, #tpu.memory_space<vmem>>, vector<1x1x64xf32>
    %172 = vector.shape_cast %171 : vector<1x1x64xf32> to vector<1x64xf32>
    %173 = vector.broadcast %172 : vector<1x64xf32> to vector<16x64xf32>
    %174 = arith.addf %170, %173 : vector<16x64xf32>
    %cst_68 = arith.constant 0.000000e+00 : f32
    %175 = vector.broadcast %cst_68 : f32 to vector<16x64xf32>
    %176 = arith.maximumf %174, %175 : vector<16x64xf32>
    %177 = arith.truncf %176 : vector<16x64xf32> to vector<16x64xbf16>
    %c0_69 = arith.constant 0 : index
    %c0_70 = arith.constant 0 : index
    %c0_71 = arith.constant 0 : index
    %178 = vector.load %arg13[%c0_69, %c0_70, %c0_71] : memref<1x64x32xbf16, #tpu.memory_space<vmem>>, vector<1x64x32xbf16>
    %179 = vector.shape_cast %178 : vector<1x64x32xbf16> to vector<64x32xbf16>
    %cst_72 = arith.constant dense<0.000000e+00> : vector<16x32xf32>
    %180 = tpu.matmul %177, %179, %cst_72 {dimension_numbers = #tpu.dot_dimension_numbers<[1], [0], [0], [1], [0, 0, 1, 1], [], []>} : vector<16x64xbf16>, vector<64x32xbf16>, vector<16x32xf32> -> vector<16x32xf32>
    %c0_73 = arith.constant 0 : index
    %c0_74 = arith.constant 0 : index
    %c0_75 = arith.constant 0 : index
    %181 = vector.load %arg14[%c0_73, %c0_74, %c0_75] : memref<1x1x32xf32, #tpu.memory_space<vmem>>, vector<1x1x32xf32>
    %182 = vector.shape_cast %181 : vector<1x1x32xf32> to vector<1x32xf32>
    %183 = vector.broadcast %182 : vector<1x32xf32> to vector<16x32xf32>
    %184 = arith.addf %180, %183 : vector<16x32xf32>
    %185 = arith.addf %141, %184 : vector<16x32xf32>
    %c0_76 = arith.constant 0 : index
    %c0_77 = arith.constant 0 : index
    %186 = vector.load %arg18[%c0_76, %c0_77] : memref<16x32xf32, #tpu.memory_space<vmem>>, vector<16x32xf32>
    tpu.vector_store %arg18[%c0_76, %c0_77], %185 {strides = array<i32>} : memref<16x32xf32, #tpu.memory_space<vmem>>, vector<16x32xf32>,
    %c1_i32 = arith.constant 1 : i32
    %187 = arith.cmpi eq, %arg1, %c1_i32 : i32
    %188 = arith.extui %187 : i1 to i32
    %c0_i32_78 = arith.constant 0 : i32
    %189 = arith.cmpi ne, %188, %c0_i32_78 : i32
    scf.if %189 {
      %c0_79 = arith.constant 0 : index
      %c0_80 = arith.constant 0 : index
      %190 = vector.load %arg15[%c0_79, %c0_80] : memref<1x32xf32, #tpu.memory_space<vmem>>, vector<1x32xf32>
      %c0_81 = arith.constant 0 : index
      %c0_82 = arith.constant 0 : index
      %191 = vector.load %arg16[%c0_81, %c0_82] : memref<1x32xf32, #tpu.memory_space<vmem>>, vector<1x32xf32>
      %cst_83 = arith.constant dense<0.000000e+00> : vector<16xf32>
      %192 = vector.multi_reduction <add>, %185, %cst_83 [1] : vector<16x32xf32> to vector<16xf32>
      %193 = vector.shape_cast %192 : vector<16xf32> to vector<16x1xf32>
      %cst_84 = arith.constant 3.200000e+01 : f32
      %194 = vector.broadcast %cst_84 : f32 to vector<16x1xf32>
      %195 = arith.divf %193, %194 : vector<16x1xf32>
      %196 = vector.broadcast %195 : vector<16x1xf32> to vector<16x32xf32>
      %197 = arith.subf %185, %196 : vector<16x32xf32>
      %198 = arith.mulf %197, %197 : vector<16x32xf32>
      %cst_85 = arith.constant dense<0.000000e+00> : vector<16xf32>
      %199 = vector.multi_reduction <add>, %198, %cst_85 [1] : vector<16x32xf32> to vector<16xf32>
      %200 = vector.shape_cast %199 : vector<16xf32> to vector<16x1xf32>
      %cst_86 = arith.constant 0.0322580636 : f32
      %201 = vector.broadcast %cst_86 : f32 to vector<16x1xf32>
      %202 = arith.mulf %200, %201 : vector<16x1xf32>
      %203 = math.sqrt %202 : vector<16x1xf32>
      %cst_87 = arith.constant 9.99999997E-7 : f32
      %204 = vector.broadcast %cst_87 : f32 to vector<16x1xf32>
      %205 = arith.addf %203, %204 : vector<16x1xf32>
      %206 = tpu.reciprocal %205 {approx = true} : vector<16x1xf32> -> vector<16x1xf32>
      %207 = vector.broadcast %206 : vector<16x1xf32> to vector<16x32xf32>
      %208 = arith.mulf %197, %207 : vector<16x32xf32>
      %209 = vector.broadcast %190 : vector<1x32xf32> to vector<16x32xf32>
      %210 = arith.mulf %209, %208 : vector<16x32xf32>
      %211 = vector.broadcast %191 : vector<1x32xf32> to vector<16x32xf32>
      %212 = arith.addf %210, %211 : vector<16x32xf32>
      %c0_88 = arith.constant 0 : index
      %c0_89 = arith.constant 0 : index
      %213 = vector.load %arg17[%c0_88, %c0_89] : memref<16x32xf32, #tpu.memory_space<vmem>>, vector<16x32xf32>
      tpu.vector_store %arg17[%c0_88, %c0_89], %212 {strides = array<i32>} : memref<16x32xf32, #tpu.memory_space<vmem>>, vector<16x32xf32>,
    } else {
    }
    return
  }
  func.func @transform_0(%arg0: i32, %arg1: i32) -> (i32, i32) {
    %c0_i32 = arith.constant 0 : i32
    %c0_i32_0 = arith.constant 0 : i32
    return %arg0, %c0_i32 : i32, i32
  }
  func.func @transform_1(%arg0: i32, %arg1: i32) -> (i32, i32, i32) {
    %c0_i32 = arith.constant 0 : i32
    %c0_i32_0 = arith.constant 0 : i32
    %c0_i32_1 = arith.constant 0 : i32
    return %arg1, %c0_i32, %c0_i32_0 : i32, i32, i32
  }
  func.func @transform_2(%arg0: i32, %arg1: i32) -> (i32, i32, i32) {
    %c0_i32 = arith.constant 0 : i32
    %c0_i32_0 = arith.constant 0 : i32
    %c0_i32_1 = arith.constant 0 : i32
    return %arg1, %c0_i32, %c0_i32_0 : i32, i32, i32
  }
  func.func @transform_3(%arg0: i32, %arg1: i32) -> (i32, i32, i32) {
    %c0_i32 = arith.constant 0 : i32
    %c0_i32_0 = arith.constant 0 : i32
    %c0_i32_1 = arith.constant 0 : i32
    return %arg1, %c0_i32, %c0_i32_0 : i32, i32, i32
  }
  func.func @transform_4(%arg0: i32, %arg1: i32) -> (i32, i32, i32) {
    %c0_i32 = arith.constant 0 : i32
    %c0_i32_0 = arith.constant 0 : i32
    %c0_i32_1 = arith.constant 0 : i32
    return %arg1, %c0_i32, %c0_i32_0 : i32, i32, i32
  }
  func.func @transform_5(%arg0: i32, %arg1: i32) -> (i32, i32, i32) {
    %c0_i32 = arith.constant 0 : i32
    %c0_i32_0 = arith.constant 0 : i32
    %c0_i32_1 = arith.constant 0 : i32
    return %arg1, %c0_i32, %c0_i32_0 : i32, i32, i32
  }
  func.func @transform_6(%arg0: i32, %arg1: i32) -> (i32, i32, i32) {
    %c0_i32 = arith.constant 0 : i32
    %c0_i32_0 = arith.constant 0 : i32
    %c0_i32_1 = arith.constant 0 : i32
    return %arg1, %c0_i32, %c0_i32_0 : i32, i32, i32
  }
  func.func @transform_7(%arg0: i32, %arg1: i32) -> (i32, i32, i32) {
    %c0_i32 = arith.constant 0 : i32
    %c0_i32_0 = arith.constant 0 : i32
    %c0_i32_1 = arith.constant 0 : i32
    return %arg1, %c0_i32, %c0_i32_0 : i32, i32, i32
  }
  func.func @transform_8(%arg0: i32, %arg1: i32) -> (i32, i32, i32) {
    %c0_i32 = arith.constant 0 : i32
    %c0_i32_0 = arith.constant 0 : i32
    %c0_i32_1 = arith.constant 0 : i32
    return %arg1, %c0_i32, %c0_i32_0 : i32, i32, i32
  }
  func.func @transform_9(%arg0: i32, %arg1: i32) -> (i32, i32, i32) {
    %c0_i32 = arith.constant 0 : i32
    %c0_i32_0 = arith.constant 0 : i32
    %c0_i32_1 = arith.constant 0 : i32
    return %arg1, %c0_i32, %c0_i32_0 : i32, i32, i32
  }
  func.func @transform_10(%arg0: i32, %arg1: i32) -> (i32, i32, i32) {
    %c0_i32 = arith.constant 0 : i32
    %c0_i32_0 = arith.constant 0 : i32
    %c0_i32_1 = arith.constant 0 : i32
    return %arg1, %c0_i32, %c0_i32_0 : i32, i32, i32
  }
  func.func @transform_11(%arg0: i32, %arg1: i32) -> (i32, i32, i32) {
    %c0_i32 = arith.constant 0 : i32
    %c0_i32_0 = arith.constant 0 : i32
    %c0_i32_1 = arith.constant 0 : i32
    return %arg1, %c0_i32, %c0_i32_0 : i32, i32, i32
  }
  func.func @transform_12(%arg0: i32, %arg1: i32) -> (i32, i32, i32) {
    %c0_i32 = arith.constant 0 : i32
    %c0_i32_0 = arith.constant 0 : i32
    %c0_i32_1 = arith.constant 0 : i32
    return %arg1, %c0_i32, %c0_i32_0 : i32, i32, i32
  }
  func.func @transform_13(%arg0: i32, %arg1: i32) -> (i32, i32) {
    %c0_i32 = arith.constant 0 : i32
    %c0_i32_0 = arith.constant 0 : i32
    %c0_i32_1 = arith.constant 0 : i32
    return %c0_i32, %c0_i32_0 : i32, i32
  }
  func.func @transform_14(%arg0: i32, %arg1: i32) -> (i32, i32) {
    %c0_i32 = arith.constant 0 : i32
    %c0_i32_0 = arith.constant 0 : i32
    %c0_i32_1 = arith.constant 0 : i32
    return %c0_i32, %c0_i32_0 : i32, i32
  }
  func.func @transform_15(%arg0: i32, %arg1: i32) -> (i32, i32) {
    %c0_i32 = arith.constant 0 : i32
    %c0_i32_0 = arith.constant 0 : i32
    return %arg0, %c0_i32 : i32, i32
  }
}

</mosaic_0001>

<llo_original>
// kernel: encoder_forward.1
$region0: #{encoder_forward.1}
  #allocation0 [shape = 'u32[]', space=smem, size = 0x4, offset = 0x4, fixed_abs, tag = 'smem constant byte address 0x4 - core index']
  #allocation1 [shape = 'u32[144,128]{1,0:T(1,128)}', space=vmem, size = 0x12000, scoped, tag = 'internal scratch']
  #allocation2 [shape = 'f32[16,32]{1,0:T(8,128)}', space=vmem, size = 0x2000, scoped, tag = 'scratch operand']
  %s0 = inlined_call_operand.vmem [shape: f32[16,32], index: 0, kind: input, shape index: {}]
  %s1 = inlined_call_operand.vmem [shape: bf16[2,32,96], index: 1, kind: input, shape index: {}]
  %s2 = inlined_call_operand.vmem [shape: f32[2,1,96], index: 2, kind: input, shape index: {}]
  %s3 = inlined_call_operand.vmem [shape: bf16[2,32,32], index: 3, kind: input, shape index: {}]
  %s4 = inlined_call_operand.vmem [shape: f32[2,1,32], index: 4, kind: input, shape index: {}]
  %s5 = inlined_call_operand.vmem [shape: f32[2,1,32], index: 5, kind: input, shape index: {}]
  %s6 = inlined_call_operand.vmem [shape: f32[2,1,32], index: 6, kind: input, shape index: {}]
  %s7 = inlined_call_operand.vmem [shape: f32[2,1,32], index: 7, kind: input, shape index: {}]
  %s8 = inlined_call_operand.vmem [shape: f32[2,1,32], index: 8, kind: input, shape index: {}]
  %s9 = inlined_call_operand.vmem [shape: bf16[2,32,64], index: 9, kind: input, shape index: {}]
  %s10 = inlined_call_operand.vmem [shape: f32[2,1,64], index: 10, kind: input, shape index: {}]
  %s11 = inlined_call_operand.vmem [shape: bf16[2,64,32], index: 11, kind: input, shape index: {}]
  %s12 = inlined_call_operand.vmem [shape: f32[2,1,32], index: 12, kind: input, shape index: {}]
  %s13 = inlined_call_operand.vmem [shape: f32[1,32], index: 13, kind: input, shape index: {}]
  %s14 = inlined_call_operand.vmem [shape: f32[1,32], index: 14, kind: input, shape index: {}]
  %s15 = inlined_call_operand.hbm [shape: f32[16,32], index: 15, kind: output, shape index: {}]
  %s16 = sld [smem:[#allocation0]]
  $region101: #{encoder_forward.1} parent=0
    _
  %s18 = ssub.s32 1, %s16
  %s19 = scalar_select 0, %s18, %s16
  $region1: #{encoder_forward.1} parent=0
    #allocation3 [shape = 'u8[8192]{0}', space=vmem, size = 0x2000, scoped, tag = 'output window, operand 0, single buffered']
    #allocation4 [shape = 's32[2]{0}', space=sflag, size = 0x8, scoped, tag = 'scoped memory for encoder_forward.1']
    %20 = vsyncpa [#allocation4], 0
    loop: start=0, step=1, limit=4
    $region2: #{encoder_forward.1} parent=1 // loop_pre_header
      _
    $region3: #{encoder_forward.1} parent=1 // loop_header
      %s22 = sphi 0, %s26
      %p23 = scmp.ge.s32.totalorder %s22, 4
      %s29 = sphi 0, %s41
      %s30 = sphi 0, %s37
      %s31 = sphi 0, %s29
      %s32 = sphi 0, %s30
      %s33 = sphi 0, %s31
      %s34 = sphi 0, %s32
      %s44 = sphi 0, %s46
      %s47 = sphi 0, %s44
      %s48 = sphi 0, %s47
      %s64 = sphi 0, %s48
      %s70 = sphi 0, %s72
      %s73 = sphi 0, %s70
      %s74 = sphi 0, %s73
      %s90 = sphi 0, %s74
      %s96 = sphi 0, %s98
      %s99 = sphi 0, %s96
      %s100 = sphi 0, %s99
      %s116 = sphi 0, %s100
      %s122 = sphi 0, %s124
      %s125 = sphi 0, %s122
      %s126 = sphi 0, %s125
      %s142 = sphi 0, %s126
      %s148 = sphi 0, %s150
      %s151 = sphi 0, %s148
      %s152 = sphi 0, %s151
      %s168 = sphi 0, %s152
      %s174 = sphi 0, %s176
      %s177 = sphi 0, %s174
      %s178 = sphi 0, %s177
      %s194 = sphi 0, %s178
      %s200 = sphi 0, %s202
      %s203 = sphi 0, %s200
      %s204 = sphi 0, %s203
      %s220 = sphi 0, %s204
      %s226 = sphi 0, %s228
      %s229 = sphi 0, %s226
      %s230 = sphi 0, %s229
      %s246 = sphi 0, %s230
      %s252 = sphi 0, %s254
      %s255 = sphi 0, %s252
      %s256 = sphi 0, %s255
      %s272 = sphi 0, %s256
      %s278 = sphi 0, %s280
      %s281 = sphi 0, %s278
      %s282 = sphi 0, %s281
      %s298 = sphi 0, %s282
      %s304 = sphi 0, %s306
      %s307 = sphi 0, %s304
      %s308 = sphi 0, %s307
      %s324 = sphi 0, %s308
      %s330 = sphi 0, %s332
      %s333 = sphi 0, %s330
      %s334 = sphi 0, %s333
      %s350 = sphi 0, %s334
      %s356 = sphi 0, %s358
      %s359 = sphi 0, %s356
      %s360 = sphi 0, %s359
      %s376 = sphi 0, %s360
      %s380 = sphi 0, %s380
      %s382 = sphi 0, %s380
      %s383 = sphi 0, %s382
      %s397 = sphi 0, %s383
      %s401 = sphi 0, %s401
      %s403 = sphi 0, %s401
      %s404 = sphi 0, %s403
      %s418 = sphi 0, %s404
      %s424 = sphi 0, %s426
      %s427 = sphi 0, %s424
      %s428 = sphi 0, %s427
      %s444 = sphi 0, %s428
    $region4: #{encoder_forward.1} parent=1 // loop_header_branch
      %25 = sbr.rel (%p23) target = $region8
    $region5: #{encoder_forward.1} parent=1 // loop_body
      %s27 = ssub.s32 %s22, 1
      %s28 = ssub.s32 %s22, 2
      %s35 = sadd.s32 1, %s30
      %p36 = scmp.ge.s32.totalorder %s35, 2
      %s37 = scalar_select %p36, 0, %s35
      %s38 = sadd.s32 1, %s29
      %s39 = scalar_select %p36, %s38, %s29
      %p40 = scmp.ge.s32.totalorder %s39, 1
      %s41 = scalar_select %p40, 0, %s39
      %s42 = ssub.s32 %s29, %s41
      %p43 = scmp.eq.s32.totalorder %s42, 0
      %s45 = sadd.s32 %s44, 1
      %s46 = scalar_select %p43, %s44, %s45
      %p49 = pneg %p43
      %p50 = scmp.eq.s32.totalorder %s22, 1
      %p51 = por %p49, %p50
      %p52 = scmp.ne.s32.totalorder %s44, %s47
      %p53 = scmp.eq.s32.totalorder %s22, 0
      %p54 = por %p52, %p53
      %p55 = scmp.ne.s32.totalorder %s44, %s47
      %p56 = scmp.eq.s32.totalorder %s27, 1
      %p57 = por %p55, %p56
      %p58 = scmp.ne.s32.totalorder %s47, %s48
      %p59 = scmp.eq.s32.totalorder %s27, 0
      %p60 = por %p58, %p59
      %p61 = scmp.ne.s32.totalorder %s47, %s48
      %p62 = scmp.eq.s32.totalorder %s28, 1
      %p63 = por %p61, %p62
      %p65 = scmp.ne.s32.totalorder %s48, %s64
      %p66 = scmp.eq.s32.totalorder %s28, 0
      %p67 = por %p65, %p66
      %s68 = ssub.s32 %s30, %s37
      %p69 = scmp.eq.s32.totalorder %s68, 0
      %s71 = sadd.s32 %s70, 1
      %s72 = scalar_select %p69, %s70, %s71
      %p75 = pneg %p69
      %p76 = scmp.eq.s32.totalorder %s22, 1
      %p77 = por %p75, %p76
      %p78 = scmp.ne.s32.totalorder %s70, %s73
      %p79 = scmp.eq.s32.totalorder %s22, 0
      %p80 = por %p78, %p79
      %p81 = scmp.ne.s32.totalorder %s70, %s73
      %p82 = scmp.eq.s32.totalorder %s27, 1
      %p83 = por %p81, %p82
      %p84 = scmp.ne.s32.totalorder %s73, %s74
      %p85 = scmp.eq.s32.totalorder %s27, 0
      %p86 = por %p84, %p85
      %p87 = scmp.ne.s32.totalorder %s73, %s74
      %p88 = scmp.eq.s32.totalorder %s28, 1
      %p89 = por %p87, %p88
      %p91 = scmp.ne.s32.totalorder %s74, %s90
      %p92 = scmp.eq.s32.totalorder %s28, 0
      %p93 = por %p91, %p92
      %s94 = ssub.s32 %s30, %s37
      %p95 = scmp.eq.s32.totalorder %s94, 0
      %s97 = sadd.s32 %s96, 1
      %s98 = scalar_select %p95, %s96, %s97
      %p101 = pneg %p95
      %p102 = scmp.eq.s32.totalorder %s22, 1
      %p103 = por %p101, %p102
      %p104 = scmp.ne.s32.totalorder %s96, %s99
      %p105 = scmp.eq.s32.totalorder %s22, 0
      %p106 = por %p104, %p105
      %p107 = scmp.ne.s32.totalorder %s96, %s99
      %p108 = scmp.eq.s32.totalorder %s27, 1
      %p109 = por %p107, %p108
      %p110 = scmp.ne.s32.totalorder %s99, %s100
      %p111 = scmp.eq.s32.totalorder %s27, 0
      %p112 = por %p110, %p111
      %p113 = scmp.ne.s32.totalorder %s99, %s100
      %p114 = scmp.eq.s32.totalorder %s28, 1
      %p115 = por %p113, %p114
      %p117 = scmp.ne.s32.totalorder %s100, %s116
      %p118 = scmp.eq.s32.totalorder %s28, 0
      %p119 = por %p117, %p118
      %s120 = ssub.s32 %s30, %s37
      %p121 = scmp.eq.s32.totalorder %s120, 0
      %s123 = sadd.s32 %s122, 1
      %s124 = scalar_select %p121, %s122, %s123
      %p127 = pneg %p121
      %p128 = scmp.eq.s32.totalorder %s22, 1
      %p129 = por %p127, %p128
      %p130 = scmp.ne.s32.totalorder %s122, %s125
      %p131 = scmp.eq.s32.totalorder %s22, 0
      %p132 = por %p130, %p131
      %p133 = scmp.ne.s32.totalorder %s122, %s125
      %p134 = scmp.eq.s32.totalorder %s27, 1
      %p135 = por %p133, %p134
      %p136 = scmp.ne.s32.totalorder %s125, %s126
      %p137 = scmp.eq.s32.totalorder %s27, 0
      %p138 = por %p136, %p137
      %p139 = scmp.ne.s32.totalorder %s125, %s126
      %p140 = scmp.eq.s32.totalorder %s28, 1
      %p141 = por %p139, %p140
      %p143 = scmp.ne.s32.totalorder %s126, %s142
      %p144 = scmp.eq.s32.totalorder %s28, 0
      %p145 = por %p143, %p144
      %s146 = ssub.s32 %s30, %s37
      %p147 = scmp.eq.s32.totalorder %s146, 0
      %s149 = sadd.s32 %s148, 1
      %s150 = scalar_select %p147, %s148, %s149
      %p153 = pneg %p147
      %p154 = scmp.eq.s32.totalorder %s22, 1
      %p155 = por %p153, %p154
      %p156 = scmp.ne.s32.totalorder %s148, %s151
      %p157 = scmp.eq.s32.totalorder %s22, 0
      %p158 = por %p156, %p157
      %p159 = scmp.ne.s32.totalorder %s148, %s151
      %p160 = scmp.eq.s32.totalorder %s27, 1
      %p161 = por %p159, %p160
      %p162 = scmp.ne.s32.totalorder %s151, %s152
      %p163 = scmp.eq.s32.totalorder %s27, 0
      %p164 = por %p162, %p163
      %p165 = scmp.ne.s32.totalorder %s151, %s152
      %p166 = scmp.eq.s32.totalorder %s28, 1
      %p167 = por %p165, %p166
      %p169 = scmp.ne.s32.totalorder %s152, %s168
      %p170 = scmp.eq.s32.totalorder %s28, 0
      %p171 = por %p169, %p170
      %s172 = ssub.s32 %s30, %s37
      %p173 = scmp.eq.s32.totalorder %s172, 0
      %s175 = sadd.s32 %s174, 1
      %s176 = scalar_select %p173, %s174, %s175
      %p179 = pneg %p173
      %p180 = scmp.eq.s32.totalorder %s22, 1
      %p181 = por %p179, %p180
      %p182 = scmp.ne.s32.totalorder %s174, %s177
      %p183 = scmp.eq.s32.totalorder %s22, 0
      %p184 = por %p182, %p183
      %p185 = scmp.ne.s32.totalorder %s174, %s177
      %p186 = scmp.eq.s32.totalorder %s27, 1
      %p187 = por %p185, %p186
      %p188 = scmp.ne.s32.totalorder %s177, %s178
      %p189 = scmp.eq.s32.totalorder %s27, 0
      %p190 = por %p188, %p189
      %p191 = scmp.ne.s32.totalorder %s177, %s178
      %p192 = scmp.eq.s32.totalorder %s28, 1
      %p193 = por %p191, %p192
      %p195 = scmp.ne.s32.totalorder %s178, %s194
      %p196 = scmp.eq.s32.totalorder %s28, 0
      %p197 = por %p195, %p196
      %s198 = ssub.s32 %s30, %s37
      %p199 = scmp.eq.s32.totalorder %s198, 0
      %s201 = sadd.s32 %s200, 1
      %s202 = scalar_select %p199, %s200, %s201
      %p205 = pneg %p199
      %p206 = scmp.eq.s32.totalorder %s22, 1
      %p207 = por %p205, %p206
      %p208 = scmp.ne.s32.totalorder %s200, %s203
      %p209 = scmp.eq.s32.totalorder %s22, 0
      %p210 = por %p208, %p209
      %p211 = scmp.ne.s32.totalorder %s200, %s203
      %p212 = scmp.eq.s32.totalorder %s27, 1
      %p213 = por %p211, %p212
      %p214 = scmp.ne.s32.totalorder %s203, %s204
      %p215 = scmp.eq.s32.totalorder %s27, 0
      %p216 = por %p214, %p215
      %p217 = scmp.ne.s32.totalorder %s203, %s204
      %p218 = scmp.eq.s32.totalorder %s28, 1
      %p219 = por %p217, %p218
      %p221 = scmp.ne.s32.totalorder %s204, %s220
      %p222 = scmp.eq.s32.totalorder %s28, 0
      %p223 = por %p221, %p222
      %s224 = ssub.s32 %s30, %s37
      %p225 = scmp.eq.s32.totalorder %s224, 0
      %s227 = sadd.s32 %s226, 1
      %s228 = scalar_select %p225, %s226, %s227
      %p231 = pneg %p225
      %p232 = scmp.eq.s32.totalorder %s22, 1
      %p233 = por %p231, %p232
      %p234 = scmp.ne.s32.totalorder %s226, %s229
      %p235 = scmp.eq.s32.totalorder %s22, 0
      %p236 = por %p234, %p235
      %p237 = scmp.ne.s32.totalorder %s226, %s229
      %p238 = scmp.eq.s32.totalorder %s27, 1
      %p239 = por %p237, %p238
      %p240 = scmp.ne.s32.totalorder %s229, %s230
      %p241 = scmp.eq.s32.totalorder %s27, 0
      %p242 = por %p240, %p241
      %p243 = scmp.ne.s32.totalorder %s229, %s230
      %p244 = scmp.eq.s32.totalorder %s28, 1
      %p245 = por %p243, %p244
      %p247 = scmp.ne.s32.totalorder %s230, %s246
      %p248 = scmp.eq.s32.totalorder %s28, 0
      %p249 = por %p247, %p248
      %s250 = ssub.s32 %s30, %s37
      %p251 = scmp.eq.s32.totalorder %s250, 0
      %s253 = sadd.s32 %s252, 1
      %s254 = scalar_select %p251, %s252, %s253
      %p257 = pneg %p251
      %p258 = scmp.eq.s32.totalorder %s22, 1
      %p259 = por %p257, %p258
      %p260 = scmp.ne.s32.totalorder %s252, %s255
      %p261 = scmp.eq.s32.totalorder %s22, 0
      %p262 = por %p260, %p261
      %p263 = scmp.ne.s32.totalorder %s252, %s255
      %p264 = scmp.eq.s32.totalorder %s27, 1
      %p265 = por %p263, %p264
      %p266 = scmp.ne.s32.totalorder %s255, %s256
      %p267 = scmp.eq.s32.totalorder %s27, 0
      %p268 = por %p266, %p267
      %p269 = scmp.ne.s32.totalorder %s255, %s256
      %p270 = scmp.eq.s32.totalorder %s28, 1
      %p271 = por %p269, %p270
      %p273 = scmp.ne.s32.totalorder %s256, %s272
      %p274 = scmp.eq.s32.totalorder %s28, 0
      %p275 = por %p273, %p274
      %s276 = ssub.s32 %s30, %s37
      %p277 = scmp.eq.s32.totalorder %s276, 0
      %s279 = sadd.s32 %s278, 1
      %s280 = scalar_select %p277, %s278, %s279
      %p283 = pneg %p277
      %p284 = scmp.eq.s32.totalorder %s22, 1
      %p285 = por %p283, %p284
      %p286 = scmp.ne.s32.totalorder %s278, %s281
      %p287 = scmp.eq.s32.totalorder %s22, 0
      %p288 = por %p286, %p287
      %p289 = scmp.ne.s32.totalorder %s278, %s281
      %p290 = scmp.eq.s32.totalorder %s27, 1
      %p291 = por %p289, %p290
      %p292 = scmp.ne.s32.totalorder %s281, %s282
      %p293 = scmp.eq.s32.totalorder %s27, 0
      %p294 = por %p292, %p293
      %p295 = scmp.ne.s32.totalorder %s281, %s282
      %p296 = scmp.eq.s32.totalorder %s28, 1
      %p297 = por %p295, %p296
      %p299 = scmp.ne.s32.totalorder %s282, %s298
      %p300 = scmp.eq.s32.totalorder %s28, 0
      %p301 = por %p299, %p300
      %s302 = ssub.s32 %s30, %s37
      %p303 = scmp.eq.s32.totalorder %s302, 0
      %s305 = sadd.s32 %s304, 1
      %s306 = scalar_select %p303, %s304, %s305
      %p309 = pneg %p303
      %p310 = scmp.eq.s32.totalorder %s22, 1
      %p311 = por %p309, %p310
      %p312 = scmp.ne.s32.totalorder %s304, %s307
      %p313 = scmp.eq.s32.totalorder %s22, 0
      %p314 = por %p312, %p313
      %p315 = scmp.ne.s32.totalorder %s304, %s307
      %p316 = scmp.eq.s32.totalorder %s27, 1
      %p317 = por %p315, %p316
      %p318 = scmp.ne.s32.totalorder %s307, %s308
      %p319 = scmp.eq.s32.totalorder %s27, 0
      %p320 = por %p318, %p319
      %p321 = scmp.ne.s32.totalorder %s307, %s308
      %p322 = scmp.eq.s32.totalorder %s28, 1
      %p323 = por %p321, %p322
      %p325 = scmp.ne.s32.totalorder %s308, %s324
      %p326 = scmp.eq.s32.totalorder %s28, 0
      %p327 = por %p325, %p326
      %s328 = ssub.s32 %s30, %s37
      %p329 = scmp.eq.s32.totalorder %s328, 0
      %s331 = sadd.s32 %s330, 1
      %s332 = scalar_select %p329, %s330, %s331
      %p335 = pneg %p329
      %p336 = scmp.eq.s32.totalorder %s22, 1
      %p337 = por %p335, %p336
      %p338 = scmp.ne.s32.totalorder %s330, %s333
      %p339 = scmp.eq.s32.totalorder %s22, 0
      %p340 = por %p338, %p339
      %p341 = scmp.ne.s32.totalorder %s330, %s333
      %p342 = scmp.eq.s32.totalorder %s27, 1
      %p343 = por %p341, %p342
      %p344 = scmp.ne.s32.totalorder %s333, %s334
      %p345 = scmp.eq.s32.totalorder %s27, 0
      %p346 = por %p344, %p345
      %p347 = scmp.ne.s32.totalorder %s333, %s334
      %p348 = scmp.eq.s32.totalorder %s28, 1
      %p349 = por %p347, %p348
      %p351 = scmp.ne.s32.totalorder %s334, %s350
      %p352 = scmp.eq.s32.totalorder %s28, 0
      %p353 = por %p351, %p352
      %s354 = ssub.s32 %s30, %s37
      %p355 = scmp.eq.s32.totalorder %s354, 0
      %s357 = sadd.s32 %s356, 1
      %s358 = scalar_select %p355, %s356, %s357
      %p361 = pneg %p355
      %p362 = scmp.eq.s32.totalorder %s22, 1
      %p363 = por %p361, %p362
      %p364 = scmp.ne.s32.totalorder %s356, %s359
      %p365 = scmp.eq.s32.totalorder %s22, 0
      %p366 = por %p364, %p365
      %p367 = scmp.ne.s32.totalorder %s356, %s359
      %p368 = scmp.eq.s32.totalorder %s27, 1
      %p369 = por %p367, %p368
      %p370 = scmp.ne.s32.totalorder %s359, %s360
      %p371 = scmp.eq.s32.totalorder %s27, 0
      %p372 = por %p370, %p371
      %p373 = scmp.ne.s32.totalorder %s359, %s360
      %p374 = scmp.eq.s32.totalorder %s28, 1
      %p375 = por %p373, %p374
      %p377 = scmp.ne.s32.totalorder %s360, %s376
      %p378 = scmp.eq.s32.totalorder %s28, 0
      %p379 = por %p377, %p378
      %s381 = sadd.s32 %s380, 1
      %p384 = scmp.eq.s32.totalorder %s22, 1
      %p385 = scmp.ne.s32.totalorder %s380, %s382
      %p386 = scmp.eq.s32.totalorder %s22, 0
      %p387 = por %p385, %p386
      %p388 = scmp.ne.s32.totalorder %s380, %s382
      %p389 = scmp.eq.s32.totalorder %s27, 1
      %p390 = por %p388, %p389
      %p391 = scmp.ne.s32.totalorder %s382, %s383
      %p392 = scmp.eq.s32.totalorder %s27, 0
      %p393 = por %p391, %p392
      %p394 = scmp.ne.s32.totalorder %s382, %s383
      %p395 = scmp.eq.s32.totalorder %s28, 1
      %p396 = por %p394, %p395
      %p398 = scmp.ne.s32.totalorder %s383, %s397
      %p399 = scmp.eq.s32.totalorder %s28, 0
      %p400 = por %p398, %p399
      %s402 = sadd.s32 %s401, 1
      %p405 = scmp.eq.s32.totalorder %s22, 1
      %p406 = scmp.ne.s32.totalorder %s401, %s403
      %p407 = scmp.eq.s32.totalorder %s22, 0
      %p408 = por %p406, %p407
      %p409 = scmp.ne.s32.totalorder %s401, %s403
      %p410 = scmp.eq.s32.totalorder %s27, 1
      %p411 = por %p409, %p410
      %p412 = scmp.ne.s32.totalorder %s403, %s404
      %p413 = scmp.eq.s32.totalorder %s27, 0
      %p414 = por %p412, %p413
      %p415 = scmp.ne.s32.totalorder %s403, %s404
      %p416 = scmp.eq.s32.totalorder %s28, 1
      %p417 = por %p415, %p416
      %p419 = scmp.ne.s32.totalorder %s404, %s418
      %p420 = scmp.eq.s32.totalorder %s28, 0
      %p421 = por %p419, %p420
      %s422 = ssub.s32 %s29, %s41
      %p423 = scmp.eq.s32.totalorder %s422, 0
      %s425 = sadd.s32 %s424, 1
      %s426 = scalar_select %p423, %s424, %s425
      %p429 = pneg %p423
      %p430 = scmp.eq.s32.totalorder %s22, 1
      %p431 = por %p429, %p430
      %p432 = scmp.ne.s32.totalorder %s424, %s427
      %p433 = scmp.eq.s32.totalorder %s22, 0
      %p434 = por %p432, %p433
      %p435 = scmp.ne.s32.totalorder %s424, %s427
      %p436 = scmp.eq.s32.totalorder %s27, 1
      %p437 = por %p435, %p436
      %p438 = scmp.ne.s32.totalorder %s427, %s428
      %p439 = scmp.eq.s32.totalorder %s27, 0
      %p440 = por %p438, %p439
      %p441 = scmp.ne.s32.totalorder %s427, %s428
      %p442 = scmp.eq.s32.totalorder %s28, 1
      %p443 = por %p441, %p442
      %p445 = scmp.ne.s32.totalorder %s428, %s444
      %p446 = scmp.eq.s32.totalorder %s28, 0
      %p447 = por %p445, %p446
      %p448 = scmp.le.s32.totalorder 1, %s22
      %p449 = scmp.lt.s32.totalorder %s22, 3
      %p450 = pnand %p448, %p449
      %p451 = pneg %p450
      // Predicated region
      $region9: #{encoder_forward.1} parent=5 // pred_check
        _
      $region10: #{encoder_forward.1} parent=5 // pred_check_branch
        %453 = sbr.rel (%p450) target = $region12
      $region11: #{encoder_forward.1} parent=5 // pred_region
        %s454 = ssub.s32 %s22, 1
        // Predicated region
        $region13: #{encoder_forward.1} parent=11 // pred_check
          %p455 = pneg %p60
        $region14: #{encoder_forward.1} parent=11 // pred_check_branch
          %457 = sbr.rel (%p455) target = $region16
        $region15: #{encoder_forward.1} parent=11 // pred_region
          %s458 = smul.u32 2, %s31
          %p459 = scmp.lt.s32.totalorder %s458, 1
          %s460 = scalar_select %p459, %s458, 1
          %s461 = smul.addr %s460, 8
          %s462 = scalar_lea.vmem %s0, %s461
          %s463 = smul.u32 2, %s31
        $region16: #{encoder_forward.1} parent=11 // pred_fallthru
          _
        // Predicated region
        $region17: #{encoder_forward.1} parent=11 // pred_check
          %p464 = pneg %p393
        $region18: #{encoder_forward.1} parent=11 // pred_check_branch
          %466 = sbr.rel (%p464) target = $region20
        $region19: #{encoder_forward.1} parent=11 // pred_region
          _
        $region20: #{encoder_forward.1} parent=11 // pred_fallthru
          _
        // Predicated region
        $region21: #{encoder_forward.1} parent=11 // pred_check
          %p467 = pneg %p414
        $region22: #{encoder_forward.1} parent=11 // pred_check_branch
          %469 = sbr.rel (%p467) target = $region24
        $region23: #{encoder_forward.1} parent=11 // pred_region
          _
        $region24: #{encoder_forward.1} parent=11 // pred_fallthru
          _
      $region12: #{encoder_forward.1} parent=5 // pred_fallthru
        _
      %p470 = scmp.lt.s32.totalorder %s22, 2
      // Predicated region
      $region25: #{encoder_forward.1} parent=5 // pred_check
        %p471 = pneg %p470
      $region26: #{encoder_forward.1} parent=5 // pred_check_branch
        %473 = sbr.rel (%p471) target = $region28
      $region27: #{encoder_forward.1} parent=5 // pred_region
        // Predicated region
        $region29: #{encoder_forward.1} parent=27 // pred_check
          %p474 = pneg %p80
        $region30: #{encoder_forward.1} parent=27 // pred_check_branch
          %476 = sbr.rel (%p474) target = $region32
        $region31: #{encoder_forward.1} parent=27 // pred_region
          %p477 = scmp.lt.s32.totalorder %s30, 1
          %s478 = scalar_select %p477, %s30, 1
          %s479 = smul.addr %s478, 4
          %s480 = smul.addr %s479, 4
          %s481 = scalar_lea.vmem %s1, %s480
        $region32: #{encoder_forward.1} parent=27 // pred_fallthru
          _
        // Predicated region
        $region33: #{encoder_forward.1} parent=27 // pred_check
          %p482 = pneg %p106
        $region34: #{encoder_forward.1} parent=27 // pred_check_branch
          %484 = sbr.rel (%p482) target = $region36
        $region35: #{encoder_forward.1} parent=27 // pred_region
          %p485 = scmp.lt.s32.totalorder %s30, 1
          %s486 = scalar_select %p485, %s30, 1
          %s487 = scalar_lea.vmem %s2, %s486
        $region36: #{encoder_forward.1} parent=27 // pred_fallthru
          _
        // Predicated region
        $region37: #{encoder_forward.1} parent=27 // pred_check
          %p488 = pneg %p132
        $region38: #{encoder_forward.1} parent=27 // pred_check_branch
          %490 = sbr.rel (%p488) target = $region40
        $region39: #{encoder_forward.1} parent=27 // pred_region
          %p491 = scmp.lt.s32.totalorder %s30, 1
          %s492 = scalar_select %p491, %s30, 1
          %s493 = smul.addr %s492, 4
          %s494 = smul.addr %s493, 4
          %s495 = scalar_lea.vmem %s3, %s494
        $region40: #{encoder_forward.1} parent=27 // pred_fallthru
          _
        // Predicated region
        $region41: #{encoder_forward.1} parent=27 // pred_check
          %p496 = pneg %p158
        $region42: #{encoder_forward.1} parent=27 // pred_check_branch
          %498 = sbr.rel (%p496) target = $region44
        $region43: #{encoder_forward.1} parent=27 // pred_region
          %p499 = scmp.lt.s32.totalorder %s30, 1
          %s500 = scalar_select %p499, %s30, 1
          %s501 = scalar_lea.vmem %s4, %s500
        $region44: #{encoder_forward.1} parent=27 // pred_fallthru
          _
        // Predicated region
        $region45: #{encoder_forward.1} parent=27 // pred_check
          %p502 = pneg %p184
        $region46: #{encoder_forward.1} parent=27 // pred_check_branch
          %504 = sbr.rel (%p502) target = $region48
        $region47: #{encoder_forward.1} parent=27 // pred_region
          %p505 = scmp.lt.s32.totalorder %s30, 1
          %s506 = scalar_select %p505, %s30, 1
          %s507 = scalar_lea.vmem %s5, %s506
        $region48: #{encoder_forward.1} parent=27 // pred_fallthru
          _
        // Predicated region
        $region49: #{encoder_forward.1} parent=27 // pred_check
          %p508 = pneg %p210
        $region50: #{encoder_forward.1} parent=27 // pred_check_branch
          %510 = sbr.rel (%p508) target = $region52
        $region51: #{encoder_forward.1} parent=27 // pred_region
          %p511 = scmp.lt.s32.totalorder %s30, 1
          %s512 = scalar_select %p511, %s30, 1
          %s513 = scalar_lea.vmem %s6, %s512
        $region52: #{encoder_forward.1} parent=27 // pred_fallthru
          _
        // Predicated region
        $region53: #{encoder_forward.1} parent=27 // pred_check
          %p514 = pneg %p236
        $region54: #{encoder_forward.1} parent=27 // pred_check_branch
          %516 = sbr.rel (%p514) target = $region56
        $region55: #{encoder_forward.1} parent=27 // pred_region
          %p517 = scmp.lt.s32.totalorder %s30, 1
          %s518 = scalar_select %p517, %s30, 1
          %s519 = scalar_lea.vmem %s7, %s518
        $region56: #{encoder_forward.1} parent=27 // pred_fallthru
          _
        // Predicated region
        $region57: #{encoder_forward.1} parent=27 // pred_check
          %p520 = pneg %p262
        $region58: #{encoder_forward.1} parent=27 // pred_check_branch
          %522 = sbr.rel (%p520) target = $region60
        $region59: #{encoder_forward.1} parent=27 // pred_region
          %p523 = scmp.lt.s32.totalorder %s30, 1
          %s524 = scalar_select %p523, %s30, 1
          %s525 = scalar_lea.vmem %s8, %s524
        $region60: #{encoder_forward.1} parent=27 // pred_fallthru
          _
        // Predicated region
        $region61: #{encoder_forward.1} parent=27 // pred_check
          %p526 = pneg %p288
        $region62: #{encoder_forward.1} parent=27 // pred_check_branch
          %528 = sbr.rel (%p526) target = $region64
        $region63: #{encoder_forward.1} parent=27 // pred_region
          %p529 = scmp.lt.s32.totalorder %s30, 1
          %s530 = scalar_select %p529, %s30, 1
          %s531 = smul.addr %s530, 4
          %s532 = smul.addr %s531, 4
          %s533 = scalar_lea.vmem %s9, %s532
        $region64: #{encoder_forward.1} parent=27 // pred_fallthru
          _
        // Predicated region
        $region65: #{encoder_forward.1} parent=27 // pred_check
          %p534 = pneg %p314
        $region66: #{encoder_forward.1} parent=27 // pred_check_branch
          %536 = sbr.rel (%p534) target = $region68
        $region67: #{encoder_forward.1} parent=27 // pred_region
          %p537 = scmp.lt.s32.totalorder %s30, 1
          %s538 = scalar_select %p537, %s30, 1
          %s539 = scalar_lea.vmem %s10, %s538
        $region68: #{encoder_forward.1} parent=27 // pred_fallthru
          _
        // Predicated region
        $region69: #{encoder_forward.1} parent=27 // pred_check
          %p540 = pneg %p340
        $region70: #{encoder_forward.1} parent=27 // pred_check_branch
          %542 = sbr.rel (%p540) target = $region72
        $region71: #{encoder_forward.1} parent=27 // pred_region
          %p543 = scmp.lt.s32.totalorder %s30, 1
          %s544 = scalar_select %p543, %s30, 1
          %s545 = smul.addr %s544, 8
          %s546 = smul.addr %s545, 4
          %s547 = scalar_lea.vmem %s11, %s546
        $region72: #{encoder_forward.1} parent=27 // pred_fallthru
          _
        // Predicated region
        $region73: #{encoder_forward.1} parent=27 // pred_check
          %p548 = pneg %p366
        $region74: #{encoder_forward.1} parent=27 // pred_check_branch
          %550 = sbr.rel (%p548) target = $region76
        $region75: #{encoder_forward.1} parent=27 // pred_region
          %p551 = scmp.lt.s32.totalorder %s30, 1
          %s552 = scalar_select %p551, %s30, 1
          %s553 = scalar_lea.vmem %s12, %s552
        $region76: #{encoder_forward.1} parent=27 // pred_fallthru
          _
      $region28: #{encoder_forward.1} parent=5 // pred_fallthru
        _
      %p554 = scmp.le.s32.totalorder 1, %s22
      %p555 = scmp.lt.s32.totalorder %s22, 3
      %p556 = pnand %p554, %p555
      %p557 = pneg %p556
      // Predicated region
      $region77: #{encoder_forward.1} parent=5 // pred_check
        _
      $region78: #{encoder_forward.1} parent=5 // pred_check_branch
        %559 = sbr.rel (%p556) target = $region80
      $region79: #{encoder_forward.1} parent=5 // pred_region
        %s560 = ssub.s32 %s22, 1
        %s561 = smul.u32 2, %s31
        %p562 = scmp.lt.s32.totalorder %s561, 1
        %s563 = scalar_select %p562, %s561, 1
        %s564 = smul.addr %s563, 8
        %s565 = scalar_lea.vmem %s0, %s564
        %p566 = pneg %p60
        %p567 = pneg %p57
        %p568 = scmp.lt.s32.totalorder %s32, 1
        %s569 = scalar_select %p568, %s32, 1
        %s570 = smul.addr %s569, 4
        %s571 = smul.addr %s570, 4
        %s572 = scalar_lea.vmem %s1, %s571
        %p573 = pneg %p86
        %p574 = pneg %p83
        %p575 = scmp.lt.s32.totalorder %s32, 1
        %s576 = scalar_select %p575, %s32, 1
        %s577 = scalar_lea.vmem %s2, %s576
        %p578 = pneg %p112
        %p579 = pneg %p109
        %p580 = scmp.lt.s32.totalorder %s32, 1
        %s581 = scalar_select %p580, %s32, 1
        %s582 = smul.addr %s581, 4
        %s583 = smul.addr %s582, 4
        %s584 = scalar_lea.vmem %s3, %s583
        %p585 = pneg %p138
        %p586 = pneg %p135
        %p587 = scmp.lt.s32.totalorder %s32, 1
        %s588 = scalar_select %p587, %s32, 1
        %s589 = scalar_lea.vmem %s4, %s588
        %p590 = pneg %p164
        %p591 = pneg %p161
        %p592 = scmp.lt.s32.totalorder %s32, 1
        %s593 = scalar_select %p592, %s32, 1
        %s594 = scalar_lea.vmem %s5, %s593
        %p595 = pneg %p190
        %p596 = pneg %p187
        %p597 = scmp.lt.s32.totalorder %s32, 1
        %s598 = scalar_select %p597, %s32, 1
        %s599 = scalar_lea.vmem %s6, %s598
        %p600 = pneg %p216
        %p601 = pneg %p213
        %p602 = scmp.lt.s32.totalorder %s32, 1
        %s603 = scalar_select %p602, %s32, 1
        %s604 = scalar_lea.vmem %s7, %s603
        %p605 = pneg %p242
        %p606 = pneg %p239
        %p607 = scmp.lt.s32.totalorder %s32, 1
        %s608 = scalar_select %p607, %s32, 1
        %s609 = scalar_lea.vmem %s8, %s608
        %p610 = pneg %p268
        %p611 = pneg %p265
        %p612 = scmp.lt.s32.totalorder %s32, 1
        %s613 = scalar_select %p612, %s32, 1
        %s614 = smul.addr %s613, 4
        %s615 = smul.addr %s614, 4
        %s616 = scalar_lea.vmem %s9, %s615
        %p617 = pneg %p294
        %p618 = pneg %p291
        %p619 = scmp.lt.s32.totalorder %s32, 1
        %s620 = scalar_select %p619, %s32, 1
        %s621 = scalar_lea.vmem %s10, %s620
        %p622 = pneg %p320
        %p623 = pneg %p317
        %p624 = scmp.lt.s32.totalorder %s32, 1
        %s625 = scalar_select %p624, %s32, 1
        %s626 = smul.addr %s625, 8
        %s627 = smul.addr %s626, 4
        %s628 = scalar_lea.vmem %s11, %s627
        %p629 = pneg %p346
        %p630 = pneg %p343
        %p631 = scmp.lt.s32.totalorder %s32, 1
        %s632 = scalar_select %p631, %s32, 1
        %s633 = scalar_lea.vmem %s12, %s632
        %p634 = pneg %p372
        %p635 = pneg %p369
        %p636 = pneg %p393
        %p637 = pneg %p390
        %p638 = pneg %p414
        %p639 = pneg %p411
        %p640 = pneg %p440
        %p641 = pneg %p437
        %s642 = smul.u32 2, %s31
        %p643 = scmp.lt.s32.totalorder %s642, 1
        %s644 = scalar_select %p643, %s642, 1
        %s645 = smul.addr %s644, 8
        %s646 = scalar_lea.vmem %s0, %s645
        %s647 = smul.u32 2, %s31
        %p648 = scmp.lt.s32.totalorder %s32, 1
        %s649 = scalar_select %p648, %s32, 1
        %s650 = smul.addr %s649, 4
        %s651 = smul.addr %s650, 4
        %s652 = scalar_lea.vmem %s1, %s651
        %p653 = scmp.lt.s32.totalorder %s32, 1
        %s654 = scalar_select %p653, %s32, 1
        %s655 = scalar_lea.vmem %s2, %s654
        %p656 = scmp.lt.s32.totalorder %s32, 1
        %s657 = scalar_select %p656, %s32, 1
        %s658 = smul.addr %s657, 4
        %s659 = smul.addr %s658, 4
        %s660 = scalar_lea.vmem %s3, %s659
        %p661 = scmp.lt.s32.totalorder %s32, 1
        %s662 = scalar_select %p661, %s32, 1
        %s663 = scalar_lea.vmem %s4, %s662
        %p664 = scmp.lt.s32.totalorder %s32, 1
        %s665 = scalar_select %p664, %s32, 1
        %s666 = scalar_lea.vmem %s5, %s665
        %p667 = scmp.lt.s32.totalorder %s32, 1
        %s668 = scalar_select %p667, %s32, 1
        %s669 = scalar_lea.vmem %s6, %s668
        %p670 = scmp.lt.s32.totalorder %s32, 1
        %s671 = scalar_select %p670, %s32, 1
        %s672 = scalar_lea.vmem %s7, %s671
        %p673 = scmp.lt.s32.totalorder %s32, 1
        %s674 = scalar_select %p673, %s32, 1
        %s675 = scalar_lea.vmem %s8, %s674
        %p676 = scmp.lt.s32.totalorder %s32, 1
        %s677 = scalar_select %p676, %s32, 1
        %s678 = smul.addr %s677, 4
        %s679 = smul.addr %s678, 4
        %s680 = scalar_lea.vmem %s9, %s679
        %p681 = scmp.lt.s32.totalorder %s32, 1
        %s682 = scalar_select %p681, %s32, 1
        %s683 = scalar_lea.vmem %s10, %s682
        %p684 = scmp.lt.s32.totalorder %s32, 1
        %s685 = scalar_select %p684, %s32, 1
        %s686 = smul.addr %s685, 8
        %s687 = smul.addr %s686, 4
        %s688 = scalar_lea.vmem %s11, %s687
        %p689 = scmp.lt.s32.totalorder %s32, 1
        %s690 = scalar_select %p689, %s32, 1
        %s691 = scalar_lea.vmem %s12, %s690
        %s692 = smul.u32 2, %s31
        %p694 = scmp.eq.s32.totalorder %s32, 0
        // Predicated region
        $region81: #{encoder_forward.1} parent=79 // pred_check
          %p695 = pneg %p694
        $region82: #{encoder_forward.1} parent=79 // pred_check_branch
          %697 = sbr.rel (%p695) target = $region84
        $region83: #{encoder_forward.1} parent=79 // pred_region
          %v698 = vld [vmem:[%s646] sm:$0xff]
          %v699 = vld [vmem:[%s646 + $0x8] sm:$0xff]
          %vm700 = vcmask 261120
          %701 = vst.msk [vmem:[#allocation2] sm:$0xff] %vm700, %v698
          %702 = vst.msk [vmem:[#allocation2 + $0x8] sm:$0xff] %vm700, %v699
        $region84: #{encoder_forward.1} parent=79 // pred_fallthru
          _
        %v703 = vld [vmem:[#allocation2] sm:$0xff]
        %v704 = vld [vmem:[#allocation2 + $0x8] sm:$0xff]
        %v705 = vld [vmem:[%s666] sm:$0x1]
        %v706 = vld [vmem:[%s669] sm:$0x1]
        %vm707 = vcmask 261120
        %v708 = vsel %vm707, %v703, 0.0
        %709 = vadd.xlane.f32.xlu0 %v708
        %v710 = vpop.xlane.xlu0 %709
        %v711 = vsel %vm707, %v704, 0.0
        %712 = vadd.xlane.f32.xlu0 %v711
        %v713 = vpop.xlane.xlu0 %712
        %v714 = vrcp.pop 32.0
        %v715 = vmul.f32 %v710, %v714
        %v716 = vmul.f32 %v713, %v714
        %v717 = vsub.f32 %v703, %v715
        %v718 = vsub.f32 %v704, %v716
        %v719 = vmul.f32 %v717, %v717
        %v720 = vmul.f32 %v718, %v718
        %v721 = vsel %vm707, %v719, 0.0
        %722 = vadd.xlane.f32.xlu0 %v721
        %v723 = vpop.xlane.xlu0 %722
        %v724 = vsel %vm707, %v720, 0.0
        %725 = vadd.xlane.f32.xlu0 %v724
        %v726 = vpop.xlane.xlu0 %725
        %v727 = vmul.f32 %v723, 0.032258064
        %v728 = vmul.f32 %v726, 0.032258064
        %v729 = vrsqrt.pop %v727
        %v730 = vmul.f32 %v727, %v729
        %vm731 = vcmp.eq.f32.partialorder %v727, inf
        %v732 = vsel %vm731, %v727, %v730
        %vm733 = vcmp.eq.f32.partialorder %v727, 0.0
        %v734 = vand.u32 %v727, 2147483648
        %v735 = vsel %vm733, %v734, %v732
        %v736 = vrsqrt.pop %v728
        %v737 = vmul.f32 %v728, %v736
        %vm738 = vcmp.eq.f32.partialorder %v728, inf
        %v739 = vsel %vm738, %v728, %v737
        %vm740 = vcmp.eq.f32.partialorder %v728, 0.0
        %v741 = vand.u32 %v728, 2147483648
        %v742 = vsel %vm740, %v741, %v739
        %v743 = vadd.f32 %v735, 1e-06
        %v744 = vadd.f32 %v742, 1e-06
        %v745 = vrcp.pop %v743
        %v746 = vrcp.pop %v744
        %v747 = vmul.f32 %v717, %v745
        %v748 = vmul.f32 %v718, %v746
        %v750 = vlaneseq
        %v751 = vshrl.u32 %v750, 7
        %v752 = vsub.s32 0, %v751
        %v753 = vrot.slane %v705, %v752
        %v755 = vmul.f32 %v753, %v747
        %v756 = vmul.f32 %v753, %v748
        %v758 = vlaneseq
        %v759 = vshrl.u32 %v758, 7
        %v760 = vsub.s32 0, %v759
        %v761 = vrot.slane %v706, %v760
        %v763 = vadd.f32 %v755, %v761
        %v764 = vadd.f32 %v756, %v761
        %v765 = vpack.c.bf16 %v764, %v763
        %v766 = vld [vmem:[%s652] sm:$0xf]
        %v767 = vld [vmem:[%s652 + $0x4] sm:$0xf]
        %v768 = vld [vmem:[%s652 + $0x8] sm:$0xf]
        %v769 = vld [vmem:[%s652 + $0xc] sm:$0xf]
        %v770 = vld [vmem:[%s655] sm:$0x1]
        %v772 = vlaneseq
        %v773 = vshrl.u32 %v772, 7
        %v774 = vsub.s32 0, %v773
        %v775 = vrot.slane %v770, %v774
        %v781 = vunpack.c.l.b16 %v766
        %v782 = vunpack.c.l.b16 %v767
        %v783 = vunpack.c.l.b16 %v768
        %v784 = vunpack.c.l.b16 %v769
        %v785 = vpack.c.b16 %v782, %v781
        %v786 = vpack.c.b16 %v784, %v783
        %v790 = vsel %vm707, %v765, 0
        %792 = vmatprep.subr.bf16.mxu0 0
        %793 = vmatpush1.bf16.msra.mxu0 0
        %794 = vmatprep.subr.bf16.mxu0 0
        %795 = vmatpush1.bf16.msra.mxu0 0
        %796 = vmatprep.subr.bf16.mxu0 0
        %797 = vmatpush1.bf16.msra.mxu0 0
        %798 = vmatprep.subr.bf16.mxu0 0
        %799 = vmatpush1.bf16.msra.mxu0 0
        %800 = vmatprep.subr.bf16.mxu0 0
        %801 = vmatpush1.bf16.msra.mxu0 0
        %802 = vmatprep.subr.bf16.mxu0 0
        %803 = vmatpush1.bf16.msra.mxu0 0
        %804 = vmatprep.subr.bf16.mxu0 0
        %805 = vmatpush1.bf16.msra.mxu0 %v786
        %806 = vmatprep.subr.bf16.mxu0 0
        %807 = vmatpush1.bf16.msra.mxu0 %v785
        %808 = vmatprep.subr.bf16.mxu0 0
        %809 = vmatpush2.bf16.msra.mxu0 0
        %810 = vmatprep.subr.bf16.mxu0 0
        %811 = vmatpush2.bf16.msra.mxu0 0
        %812 = vmatprep.subr.bf16.mxu0 0
        %813 = vmatpush2.bf16.msra.mxu0 0
        %814 = vmatprep.subr.bf16.mxu0 0
        %815 = vmatpush2.bf16.msra.mxu0 0
        %816 = vmatprep.subr.bf16.mxu0 0
        %817 = vmatpush2.bf16.msra.mxu0 0
        %818 = vmatprep.subr.bf16.mxu0 0
        %819 = vmatpush2.bf16.msra.mxu0 0
        %820 = vmatprep.subr.bf16.mxu0 0
        %821 = vmatpush2.bf16.msra.mxu0 0
        %822 = vmatprep.subr.bf16.mxu0 0
        %823 = vmatpush2.bf16.msra.mxu0 0
        %824 = vmatprep.mubr.bf16.mxu0 0
        %825 = vmatmul.mubr.bf16.gmra.mxu0 %v790
        %v826 = vpop.f32.mrf.mxu0
        %v827 = vadd.f32 %v775, %v826
        %v828 = vpop.f32.mrf.mxu0
        %v829 = vpop.f32.mrf.mxu0
        %v830 = vadd.f32 %v775, %v829
        %v831 = vpop.f32.mrf.mxu0
        %832 = vdwg.mxu0
        %v833 = vpack.c.bf16 %v827, %v827
        %v834 = vpack.c.bf16 %v830, %v830
        %v835 = vld [vmem:[%s660] sm:$0xf]
        %v836 = vld [vmem:[%s660 + $0x4] sm:$0xf]
        %v837 = vld [vmem:[%s660 + $0x8] sm:$0xf]
        %v838 = vld [vmem:[%s660 + $0xc] sm:$0xf]
        %840 = vrot.lane.b32.xlu0 %v833, 96
        %v841 = vpop.permute.xlu0 %840
        %vm842 = vcmask 64512
        %v844 = vsel %vm842, %v833, 0
        %v847 = vsel %vm842, %v841, 0
        %849 = vmatprep.subr.bf16.mxu0 0
        %850 = vmatpush1.bf16.xpose.msra.mxu0 0
        %851 = vmatprep.subr.bf16.mxu0 0
        %852 = vmatpush1.bf16.xpose.msra.mxu0 0
        %853 = vmatprep.subr.bf16.mxu0 0
        %854 = vmatpush1.bf16.xpose.msra.mxu0 0
        %855 = vmatprep.subr.bf16.mxu0 0
        %856 = vmatpush1.bf16.xpose.msra.mxu0 0
        %857 = vmatprep.subr.bf16.mxu0 0
        %858 = vmatpush1.bf16.xpose.msra.mxu0 0
        %859 = vmatprep.subr.bf16.mxu0 0
        %860 = vmatpush1.bf16.xpose.msra.mxu0 0
        %861 = vmatprep.subr.bf16.mxu0 0
        %862 = vmatpush1.bf16.xpose.msra.mxu0 0
        %863 = vmatprep.subr.bf16.mxu0 0
        %864 = vmatpush1.bf16.xpose.msra.mxu0 %v847
        %865 = vmatprep.subr.bf16.mxu0 0
        %866 = vmatpush2.bf16.xpose.msra.mxu0 0
        %867 = vmatprep.subr.bf16.mxu0 0
        %868 = vmatpush2.bf16.xpose.msra.mxu0 0
        %869 = vmatprep.subr.bf16.mxu0 0
        %870 = vmatpush2.bf16.xpose.msra.mxu0 0
        %871 = vmatprep.subr.bf16.mxu0 0
        %872 = vmatpush2.bf16.xpose.msra.mxu0 0
        %873 = vmatprep.subr.bf16.mxu0 0
        %874 = vmatpush2.bf16.xpose.msra.mxu0 0
        %875 = vmatprep.subr.bf16.mxu0 0
        %876 = vmatpush2.bf16.xpose.msra.mxu0 0
        %877 = vmatprep.subr.bf16.mxu0 0
        %878 = vmatpush2.bf16.xpose.msra.mxu0 0
        %879 = vmatprep.subr.bf16.mxu0 0
        %880 = vmatpush2.bf16.xpose.msra.mxu0 0
        %881 = vmatprep.mubr.bf16.mxu0 0
        %882 = vmatmul.mubr.bf16.gmra.mxu0 %v844
        %v883 = vpop.f32.mrf.mxu0
        %v884 = vadd.f32 0.0, %v883
        %v885 = vpop.f32.mrf.mxu0
        %v886 = vpop.f32.mrf.mxu0
        %v887 = vpop.f32.mrf.mxu0
        %888 = vdwg.mxu0
        %890 = vrot.lane.b32.xlu0 %v834, 96
        %v891 = vpop.permute.xlu0 %890
        %v893 = vsel %vm842, %v834, 0
        %v896 = vsel %vm842, %v891, 0
        %898 = vmatprep.subr.bf16.mxu0 0
        %899 = vmatpush1.bf16.xpose.msra.mxu0 0
        %900 = vmatprep.subr.bf16.mxu0 0
        %901 = vmatpush1.bf16.xpose.msra.mxu0 0
        %902 = vmatprep.subr.bf16.mxu0 0
        %903 = vmatpush1.bf16.xpose.msra.mxu0 0
        %904 = vmatprep.subr.bf16.mxu0 0
        %905 = vmatpush1.bf16.xpose.msra.mxu0 0
        %906 = vmatprep.subr.bf16.mxu0 0
        %907 = vmatpush1.bf16.xpose.msra.mxu0 0
        %908 = vmatprep.subr.bf16.mxu0 0
        %909 = vmatpush1.bf16.xpose.msra.mxu0 0
        %910 = vmatprep.subr.bf16.mxu0 0
        %911 = vmatpush1.bf16.xpose.msra.mxu0 0
        %912 = vmatprep.subr.bf16.mxu0 0
        %913 = vmatpush1.bf16.xpose.msra.mxu0 %v896
        %914 = vmatprep.subr.bf16.mxu0 0
        %915 = vmatpush2.bf16.xpose.msra.mxu0 0
        %916 = vmatprep.subr.bf16.mxu0 0
        %917 = vmatpush2.bf16.xpose.msra.mxu0 0
        %918 = vmatprep.subr.bf16.mxu0 0
        %919 = vmatpush2.bf16.xpose.msra.mxu0 0
        %920 = vmatprep.subr.bf16.mxu0 0
        %921 = vmatpush2.bf16.xpose.msra.mxu0 0
        %922 = vmatprep.subr.bf16.mxu0 0
        %923 = vmatpush2.bf16.xpose.msra.mxu0 0
        %924 = vmatprep.subr.bf16.mxu0 0
        %925 = vmatpush2.bf16.xpose.msra.mxu0 0
        %926 = vmatprep.subr.bf16.mxu0 0
        %927 = vmatpush2.bf16.xpose.msra.mxu0 0
        %928 = vmatprep.subr.bf16.mxu0 0
        %929 = vmatpush2.bf16.xpose.msra.mxu0 0
        %930 = vmatprep.mubr.bf16.mxu0 0
        %931 = vmatmul.mubr.bf16.gmra.mxu0 %v893
        %v932 = vpop.f32.mrf.mxu0
        %v933 = vadd.f32 0.0, %v932
        %v934 = vpop.f32.mrf.mxu0
        %v935 = vpop.f32.mrf.mxu0
        %v936 = vpop.f32.mrf.mxu0
        %937 = vdwg.mxu0
        %v938 = vmul.f32 %v884, 0.35355338
        %v939 = vmul.f32 %v933, 0.35355338
        %v940 = vsel %vm842, %v938, -inf
        %941 = vmax.xlane.f32.xlu0 %v940
        %v942 = vpop.xlane.xlu0 %941
        %v943 = vsel %vm842, %v939, -inf
        %944 = vmax.xlane.f32.xlu0 %v943
        %v945 = vpop.xlane.xlu0 %944
        %v946 = vsub.f32 %v938, %v942
        %v947 = vsub.f32 %v939, %v945
        %v948 = vmul.f32 %v946, 1.442695
        %v949 = vpow.pop %v948
        %v950 = vmul.f32 %v947, 1.442695
        %v951 = vpow.pop %v950
        %v952 = vsel %vm842, %v949, 0.0
        %953 = vadd.xlane.f32.xlu0 %v952
        %v954 = vpop.xlane.xlu0 %953
        %v955 = vsel %vm842, %v951, 0.0
        %956 = vadd.xlane.f32.xlu0 %v955
        %v957 = vpop.xlane.xlu0 %956
        %v958 = vrcp.pop %v954
        %v959 = vrcp.pop %v957
        %v960 = vmul.f32 %v949, %v958
        %v961 = vmul.f32 %v951, %v959
        %v962 = vpack.c.bf16 %v960, %v960
        %v963 = vpack.c.bf16 %v961, %v961
        %964 = vrot.lane.b32.xlu0 %v833, 64
        %v965 = vpop.permute.xlu0 %964
        %v967 = vsel %vm842, %v962, 0
        %vm969 = vcmask 1043456
        %v971 = vsel %vm969, %v965, 0
        %973 = vmatprep.subr.bf16.mxu0 0
        %974 = vmatpush1.bf16.msra.mxu0 0
        %975 = vmatprep.subr.bf16.mxu0 0
        %976 = vmatpush1.bf16.msra.mxu0 0
        %977 = vmatprep.subr.bf16.mxu0 0
        %978 = vmatpush1.bf16.msra.mxu0 0
        %979 = vmatprep.subr.bf16.mxu0 0
        %980 = vmatpush1.bf16.msra.mxu0 0
        %981 = vmatprep.subr.bf16.mxu0 0
        %982 = vmatpush1.bf16.msra.mxu0 0
        %983 = vmatprep.subr.bf16.mxu0 0
        %984 = vmatpush1.bf16.msra.mxu0 0
        %985 = vmatprep.subr.bf16.mxu0 0
        %986 = vmatpush1.bf16.msra.mxu0 0
        %987 = vmatprep.subr.bf16.mxu0 0
        %988 = vmatpush1.bf16.msra.mxu0 %v971
        %989 = vmatprep.subr.bf16.mxu0 0
        %990 = vmatpush2.bf16.msra.mxu0 0
        %991 = vmatprep.subr.bf16.mxu0 0
        %992 = vmatpush2.bf16.msra.mxu0 0
        %993 = vmatprep.subr.bf16.mxu0 0
        %994 = vmatpush2.bf16.msra.mxu0 0
        %995 = vmatprep.subr.bf16.mxu0 0
        %996 = vmatpush2.bf16.msra.mxu0 0
        %997 = vmatprep.subr.bf16.mxu0 0
        %998 = vmatpush2.bf16.msra.mxu0 0
        %999 = vmatprep.subr.bf16.mxu0 0
        %1000 = vmatpush2.bf16.msra.mxu0 0
        %1001 = vmatprep.subr.bf16.mxu0 0
        %1002 = vmatpush2.bf16.msra.mxu0 0
        %1003 = vmatprep.subr.bf16.mxu0 0
        %1004 = vmatpush2.bf16.msra.mxu0 0
        %1005 = vmatprep.mubr.bf16.mxu0 0
        %1006 = vmatmul.mubr.bf16.gmra.mxu0 %v967
        %v1007 = vpop.f32.mrf.mxu0
        %v1008 = vadd.f32 0.0, %v1007
        %v1009 = vpop.f32.mrf.mxu0
        %v1010 = vpop.f32.mrf.mxu0
        %v1011 = vpop.f32.mrf.mxu0
        %1012 = vdwg.mxu0
        %1013 = vrot.lane.b32.xlu0 %v834, 64
        %v1014 = vpop.permute.xlu0 %1013
        %v1016 = vsel %vm842, %v963, 0
        %v1019 = vsel %vm969, %v1014, 0
        %1021 = vmatprep.subr.bf16.mxu0 0
        %1022 = vmatpush1.bf16.msra.mxu0 0
        %1023 = vmatprep.subr.bf16.mxu0 0
        %1024 = vmatpush1.bf16.msra.mxu0 0
        %1025 = vmatprep.subr.bf16.mxu0 0
        %1026 = vmatpush1.bf16.msra.mxu0 0
        %1027 = vmatprep.subr.bf16.mxu0 0
        %1028 = vmatpush1.bf16.msra.mxu0 0
        %1029 = vmatprep.subr.bf16.mxu0 0
        %1030 = vmatpush1.bf16.msra.mxu0 0
        %1031 = vmatprep.subr.bf16.mxu0 0
        %1032 = vmatpush1.bf16.msra.mxu0 0
        %1033 = vmatprep.subr.bf16.mxu0 0
        %1034 = vmatpush1.bf16.msra.mxu0 0
        %1035 = vmatprep.subr.bf16.mxu0 0
        %1036 = vmatpush1.bf16.msra.mxu0 %v1019
        %1037 = vmatprep.subr.bf16.mxu0 0
        %1038 = vmatpush2.bf16.msra.mxu0 0
        %1039 = vmatprep.subr.bf16.mxu0 0
        %1040 = vmatpush2.bf16.msra.mxu0 0
        %1041 = vmatprep.subr.bf16.mxu0 0
        %1042 = vmatpush2.bf16.msra.mxu0 0
        %1043 = vmatprep.subr.bf16.mxu0 0
        %1044 = vmatpush2.bf16.msra.mxu0 0
        %1045 = vmatprep.subr.bf16.mxu0 0
        %1046 = vmatpush2.bf16.msra.mxu0 0
        %1047 = vmatprep.subr.bf16.mxu0 0
        %1048 = vmatpush2.bf16.msra.mxu0 0
        %1049 = vmatprep.subr.bf16.mxu0 0
        %1050 = vmatpush2.bf16.msra.mxu0 0
        %1051 = vmatprep.subr.bf16.mxu0 0
        %1052 = vmatpush2.bf16.msra.mxu0 0
        %1053 = vmatprep.mubr.bf16.mxu0 0
        %1054 = vmatmul.mubr.bf16.gmra.mxu0 %v1016
        %v1055 = vpop.f32.mrf.mxu0
        %v1056 = vadd.f32 0.0, %v1055
        %v1057 = vpop.f32.mrf.mxu0
        %v1058 = vpop.f32.mrf.mxu0
        %v1059 = vpop.f32.mrf.mxu0
        %1060 = vdwg.mxu0
        %v1061 = vpack.c.bf16 %v1056, %v1008
        %1062 = vrot.lane.b32.xlu0 %v833, 120
        %v1063 = vpop.permute.xlu0 %1062
        %1064 = vrot.lane.b32.xlu0 %v833, 88
        %v1065 = vpop.permute.xlu0 %1064
        %v1067 = vsel %vm842, %v1063, 0
        %v1070 = vsel %vm842, %v1065, 0
        %1072 = vmatprep.subr.bf16.mxu0 0
        %1073 = vmatpush1.bf16.xpose.msra.mxu0 0
        %1074 = vmatprep.subr.bf16.mxu0 0
        %1075 = vmatpush1.bf16.xpose.msra.mxu0 0
        %1076 = vmatprep.subr.bf16.mxu0 0
        %1077 = vmatpush1.bf16.xpose.msra.mxu0 0
        %1078 = vmatprep.subr.bf16.mxu0 0
        %1079 = vmatpush1.bf16.xpose.msra.mxu0 0
        %1080 = vmatprep.subr.bf16.mxu0 0
        %1081 = vmatpush1.bf16.xpose.msra.mxu0 0
        %1082 = vmatprep.subr.bf16.mxu0 0
        %1083 = vmatpush1.bf16.xpose.msra.mxu0 0
        %1084 = vmatprep.subr.bf16.mxu0 0
        %1085 = vmatpush1.bf16.xpose.msra.mxu0 0
        %1086 = vmatprep.subr.bf16.mxu0 0
        %1087 = vmatpush1.bf16.xpose.msra.mxu0 %v1070
        %1088 = vmatprep.subr.bf16.mxu0 0
        %1089 = vmatpush2.bf16.xpose.msra.mxu0 0
        %1090 = vmatprep.subr.bf16.mxu0 0
        %1091 = vmatpush2.bf16.xpose.msra.mxu0 0
        %1092 = vmatprep.subr.bf16.mxu0 0
        %1093 = vmatpush2.bf16.xpose.msra.mxu0 0
        %1094 = vmatprep.subr.bf16.mxu0 0
        %1095 = vmatpush2.bf16.xpose.msra.mxu0 0
        %1096 = vmatprep.subr.bf16.mxu0 0
        %1097 = vmatpush2.bf16.xpose.msra.mxu0 0
        %1098 = vmatprep.subr.bf16.mxu0 0
        %1099 = vmatpush2.bf16.xpose.msra.mxu0 0
        %1100 = vmatprep.subr.bf16.mxu0 0
        %1101 = vmatpush2.bf16.xpose.msra.mxu0 0
        %1102 = vmatprep.subr.bf16.mxu0 0
        %1103 = vmatpush2.bf16.xpose.msra.mxu0 0
        %1104 = vmatprep.mubr.bf16.mxu0 0
        %1105 = vmatmul.mubr.bf16.gmra.mxu0 %v1067
        %v1106 = vpop.f32.mrf.mxu0
        %v1107 = vadd.f32 0.0, %v1106
        %v1108 = vpop.f32.mrf.mxu0
        %v1109 = vpop.f32.mrf.mxu0
        %v1110 = vpop.f32.mrf.mxu0
        %1111 = vdwg.mxu0
        %1112 = vrot.lane.b32.xlu0 %v834, 120
        %v1113 = vpop.permute.xlu0 %1112
        %1114 = vrot.lane.b32.xlu0 %v834, 88
        %v1115 = vpop.permute.xlu0 %1114
        %v1117 = vsel %vm842, %v1113, 0
        %v1120 = vsel %vm842, %v1115, 0
        %1122 = vmatprep.subr.bf16.mxu0 0
        %1123 = vmatpush1.bf16.xpose.msra.mxu0 0
        %1124 = vmatprep.subr.bf16.mxu0 0
        %1125 = vmatpush1.bf16.xpose.msra.mxu0 0
        %1126 = vmatprep.subr.bf16.mxu0 0
        %1127 = vmatpush1.bf16.xpose.msra.mxu0 0
        %1128 = vmatprep.subr.bf16.mxu0 0
        %1129 = vmatpush1.bf16.xpose.msra.mxu0 0
        %1130 = vmatprep.subr.bf16.mxu0 0
        %1131 = vmatpush1.bf16.xpose.msra.mxu0 0
        %1132 = vmatprep.subr.bf16.mxu0 0
        %1133 = vmatpush1.bf16.xpose.msra.mxu0 0
        %1134 = vmatprep.subr.bf16.mxu0 0
        %1135 = vmatpush1.bf16.xpose.msra.mxu0 0
        %1136 = vmatprep.subr.bf16.mxu0 0
        %1137 = vmatpush1.bf16.xpose.msra.mxu0 %v1120
        %1138 = vmatprep.subr.bf16.mxu0 0
        %1139 = vmatpush2.bf16.xpose.msra.mxu0 0
        %1140 = vmatprep.subr.bf16.mxu0 0
        %1141 = vmatpush2.bf16.xpose.msra.mxu0 0
        %1142 = vmatprep.subr.bf16.mxu0 0
        %1143 = vmatpush2.bf16.xpose.msra.mxu0 0
        %1144 = vmatprep.subr.bf16.mxu0 0
        %1145 = vmatpush2.bf16.xpose.msra.mxu0 0
        %1146 = vmatprep.subr.bf16.mxu0 0
        %1147 = vmatpush2.bf16.xpose.msra.mxu0 0
        %1148 = vmatprep.subr.bf16.mxu0 0
        %1149 = vmatpush2.bf16.xpose.msra.mxu0 0
        %1150 = vmatprep.subr.bf16.mxu0 0
        %1151 = vmatpush2.bf16.xpose.msra.mxu0 0
        %1152 = vmatprep.subr.bf16.mxu0 0
        %1153 = vmatpush2.bf16.xpose.msra.mxu0 0
        %1154 = vmatprep.mubr.bf16.mxu0 0
        %1155 = vmatmul.mubr.bf16.gmra.mxu0 %v1117
        %v1156 = vpop.f32.mrf.mxu0
        %v1157 = vadd.f32 0.0, %v1156
        %v1158 = vpop.f32.mrf.mxu0
        %v1159 = vpop.f32.mrf.mxu0
        %v1160 = vpop.f32.mrf.mxu0
        %1161 = vdwg.mxu0
        %v1162 = vmul.f32 %v1107, 0.35355338
        %v1163 = vmul.f32 %v1157, 0.35355338
        %v1164 = vsel %vm842, %v1162, -inf
        %1165 = vmax.xlane.f32.xlu0 %v1164
        %v1166 = vpop.xlane.xlu0 %1165
        %v1167 = vsel %vm842, %v1163, -inf
        %1168 = vmax.xlane.f32.xlu0 %v1167
        %v1169 = vpop.xlane.xlu0 %1168
        %v1170 = vsub.f32 %v1162, %v1166
        %v1171 = vsub.f32 %v1163, %v1169
        %v1172 = vmul.f32 %v1170, 1.442695
        %v1173 = vpow.pop %v1172
        %v1174 = vmul.f32 %v1171, 1.442695
        %v1175 = vpow.pop %v1174
        %v1176 = vsel %vm842, %v1173, 0.0
        %1177 = vadd.xlane.f32.xlu0 %v1176
        %v1178 = vpop.xlane.xlu0 %1177
        %v1179 = vsel %vm842, %v1175, 0.0
        %1180 = vadd.xlane.f32.xlu0 %v1179
        %v1181 = vpop.xlane.xlu0 %1180
        %v1182 = vrcp.pop %v1178
        %v1183 = vrcp.pop %v1181
        %v1184 = vmul.f32 %v1173, %v1182
        %v1185 = vmul.f32 %v1175, %v1183
        %v1186 = vpack.c.bf16 %v1184, %v1184
        %v1187 = vpack.c.bf16 %v1185, %v1185
        %1188 = vrot.lane.b32.xlu0 %v833, 56
        %v1189 = vpop.permute.xlu0 %1188
        %v1191 = vsel %vm842, %v1186, 0
        %v1194 = vsel %vm969, %v1189, 0
        %1196 = vmatprep.subr.bf16.mxu0 0
        %1197 = vmatpush1.bf16.msra.mxu0 0
        %1198 = vmatprep.subr.bf16.mxu0 0
        %1199 = vmatpush1.bf16.msra.mxu0 0
        %1200 = vmatprep.subr.bf16.mxu0 0
        %1201 = vmatpush1.bf16.msra.mxu0 0
        %1202 = vmatprep.subr.bf16.mxu0 0
        %1203 = vmatpush1.bf16.msra.mxu0 0
        %1204 = vmatprep.subr.bf16.mxu0 0
        %1205 = vmatpush1.bf16.msra.mxu0 0
        %1206 = vmatprep.subr.bf16.mxu0 0
        %1207 = vmatpush1.bf16.msra.mxu0 0
        %1208 = vmatprep.subr.bf16.mxu0 0
        %1209 = vmatpush1.bf16.msra.mxu0 0
        %1210 = vmatprep.subr.bf16.mxu0 0
        %1211 = vmatpush1.bf16.msra.mxu0 %v1194
        %1212 = vmatprep.subr.bf16.mxu0 0
        %1213 = vmatpush2.bf16.msra.mxu0 0
        %1214 = vmatprep.subr.bf16.mxu0 0
        %1215 = vmatpush2.bf16.msra.mxu0 0
        %1216 = vmatprep.subr.bf16.mxu0 0
        %1217 = vmatpush2.bf16.msra.mxu0 0
        %1218 = vmatprep.subr.bf16.mxu0 0
        %1219 = vmatpush2.bf16.msra.mxu0 0
        %1220 = vmatprep.subr.bf16.mxu0 0
        %1221 = vmatpush2.bf16.msra.mxu0 0
        %1222 = vmatprep.subr.bf16.mxu0 0
        %1223 = vmatpush2.bf16.msra.mxu0 0
        %1224 = vmatprep.subr.bf16.mxu0 0
        %1225 = vmatpush2.bf16.msra.mxu0 0
        %1226 = vmatprep.subr.bf16.mxu0 0
        %1227 = vmatpush2.bf16.msra.mxu0 0
        %1228 = vmatprep.mubr.bf16.mxu0 0
        %1229 = vmatmul.mubr.bf16.gmra.mxu0 %v1191
        %v1230 = vpop.f32.mrf.mxu0
        %v1231 = vadd.f32 0.0, %v1230
        %v1232 = vpop.f32.mrf.mxu0
        %v1233 = vpop.f32.mrf.mxu0
        %v1234 = vpop.f32.mrf.mxu0
        %1235 = vdwg.mxu0
        %1236 = vrot.lane.b32.xlu0 %v834, 56
        %v1237 = vpop.permute.xlu0 %1236
        %v1239 = vsel %vm842, %v1187, 0
        %v1242 = vsel %vm969, %v1237, 0
        %1244 = vmatprep.subr.bf16.mxu0 0
        %1245 = vmatpush1.bf16.msra.mxu0 0
        %1246 = vmatprep.subr.bf16.mxu0 0
        %1247 = vmatpush1.bf16.msra.mxu0 0
        %1248 = vmatprep.subr.bf16.mxu0 0
        %1249 = vmatpush1.bf16.msra.mxu0 0
        %1250 = vmatprep.subr.bf16.mxu0 0
        %1251 = vmatpush1.bf16.msra.mxu0 0
        %1252 = vmatprep.subr.bf16.mxu0 0
        %1253 = vmatpush1.bf16.msra.mxu0 0
        %1254 = vmatprep.subr.bf16.mxu0 0
        %1255 = vmatpush1.bf16.msra.mxu0 0
        %1256 = vmatprep.subr.bf16.mxu0 0
        %1257 = vmatpush1.bf16.msra.mxu0 0
        %1258 = vmatprep.subr.bf16.mxu0 0
        %1259 = vmatpush1.bf16.msra.mxu0 %v1242
        %1260 = vmatprep.subr.bf16.mxu0 0
        %1261 = vmatpush2.bf16.msra.mxu0 0
        %1262 = vmatprep.subr.bf16.mxu0 0
        %1263 = vmatpush2.bf16.msra.mxu0 0
        %1264 = vmatprep.subr.bf16.mxu0 0
        %1265 = vmatpush2.bf16.msra.mxu0 0
        %1266 = vmatprep.subr.bf16.mxu0 0
        %1267 = vmatpush2.bf16.msra.mxu0 0
        %1268 = vmatprep.subr.bf16.mxu0 0
        %1269 = vmatpush2.bf16.msra.mxu0 0
        %1270 = vmatprep.subr.bf16.mxu0 0
        %1271 = vmatpush2.bf16.msra.mxu0 0
        %1272 = vmatprep.subr.bf16.mxu0 0
        %1273 = vmatpush2.bf16.msra.mxu0 0
        %1274 = vmatprep.subr.bf16.mxu0 0
        %1275 = vmatpush2.bf16.msra.mxu0 0
        %1276 = vmatprep.mubr.bf16.mxu0 0
        %1277 = vmatmul.mubr.bf16.gmra.mxu0 %v1239
        %v1278 = vpop.f32.mrf.mxu0
        %v1279 = vadd.f32 0.0, %v1278
        %v1280 = vpop.f32.mrf.mxu0
        %v1281 = vpop.f32.mrf.mxu0
        %v1282 = vpop.f32.mrf.mxu0
        %1283 = vdwg.mxu0
        %v1284 = vpack.c.bf16 %v1279, %v1231
        %v1286 = vsel %vm842, %v1284, 0
        %v1289 = vsel %vm969, %v836, 0
        %1291 = vmatprep.subr.bf16.mxu0 0
        %1292 = vmatpush1.bf16.msra.mxu0 0
        %1293 = vmatprep.subr.bf16.mxu0 0
        %1294 = vmatpush1.bf16.msra.mxu0 0
        %1295 = vmatprep.subr.bf16.mxu0 0
        %1296 = vmatpush1.bf16.msra.mxu0 0
        %1297 = vmatprep.subr.bf16.mxu0 0
        %1298 = vmatpush1.bf16.msra.mxu0 0
        %1299 = vmatprep.subr.bf16.mxu0 0
        %1300 = vmatpush1.bf16.msra.mxu0 0
        %1301 = vmatprep.subr.bf16.mxu0 0
        %1302 = vmatpush1.bf16.msra.mxu0 0
        %1303 = vmatprep.subr.bf16.mxu0 0
        %1304 = vmatpush1.bf16.msra.mxu0 0
        %1305 = vmatprep.subr.bf16.mxu0 0
        %1306 = vmatpush1.bf16.msra.mxu0 %v1289
        %1307 = vmatprep.subr.bf16.mxu0 0
        %1308 = vmatpush2.bf16.msra.mxu0 0
        %1309 = vmatprep.subr.bf16.mxu0 0
        %1310 = vmatpush2.bf16.msra.mxu0 0
        %1311 = vmatprep.subr.bf16.mxu0 0
        %1312 = vmatpush2.bf16.msra.mxu0 0
        %1313 = vmatprep.subr.bf16.mxu0 0
        %1314 = vmatpush2.bf16.msra.mxu0 0
        %1315 = vmatprep.subr.bf16.mxu0 0
        %1316 = vmatpush2.bf16.msra.mxu0 0
        %1317 = vmatprep.subr.bf16.mxu0 0
        %1318 = vmatpush2.bf16.msra.mxu0 0
        %1319 = vmatprep.subr.bf16.mxu0 0
        %1320 = vmatpush2.bf16.msra.mxu0 0
        %1321 = vmatprep.subr.bf16.mxu0 0
        %1322 = vmatpush2.bf16.msra.mxu0 0
        %1323 = vmatprep.mubr.bf16.mxu0 0
        %1324 = vmatmul.mubr.bf16.gmra.mxu0 %v1286
        %v1325 = vpop.f32.mrf.mxu0
        %v1326 = vadd.f32 0.0, %v1325
        %v1327 = vpop.f32.mrf.mxu0
        %v1328 = vpop.f32.mrf.mxu0
        %v1329 = vadd.f32 0.0, %v1328
        %v1330 = vpop.f32.mrf.mxu0
        %1331 = vdwg.mxu0
        %v1333 = vsel %vm842, %v1061, 0
        %v1336 = vsel %vm969, %v835, 0
        %1338 = vmatprep.subr.bf16.mxu0 0
        %1339 = vmatpush1.bf16.msra.mxu0 0
        %1340 = vmatprep.subr.bf16.mxu0 0
        %1341 = vmatpush1.bf16.msra.mxu0 0
        %1342 = vmatprep.subr.bf16.mxu0 0
        %1343 = vmatpush1.bf16.msra.mxu0 0
        %1344 = vmatprep.subr.bf16.mxu0 0
        %1345 = vmatpush1.bf16.msra.mxu0 0
        %1346 = vmatprep.subr.bf16.mxu0 0
        %1347 = vmatpush1.bf16.msra.mxu0 0
        %1348 = vmatprep.subr.bf16.mxu0 0
        %1349 = vmatpush1.bf16.msra.mxu0 0
        %1350 = vmatprep.subr.bf16.mxu0 0
        %1351 = vmatpush1.bf16.msra.mxu0 0
        %1352 = vmatprep.subr.bf16.mxu0 0
        %1353 = vmatpush1.bf16.msra.mxu0 %v1336
        %1354 = vmatprep.subr.bf16.mxu0 0
        %1355 = vmatpush2.bf16.msra.mxu0 0
        %1356 = vmatprep.subr.bf16.mxu0 0
        %1357 = vmatpush2.bf16.msra.mxu0 0
        %1358 = vmatprep.subr.bf16.mxu0 0
        %1359 = vmatpush2.bf16.msra.mxu0 0
        %1360 = vmatprep.subr.bf16.mxu0 0
        %1361 = vmatpush2.bf16.msra.mxu0 0
        %1362 = vmatprep.subr.bf16.mxu0 0
        %1363 = vmatpush2.bf16.msra.mxu0 0
        %1364 = vmatprep.subr.bf16.mxu0 0
        %1365 = vmatpush2.bf16.msra.mxu0 0
        %1366 = vmatprep.subr.bf16.mxu0 0
        %1367 = vmatpush2.bf16.msra.mxu0 0
        %1368 = vmatprep.subr.bf16.mxu0 0
        %1369 = vmatpush2.bf16.msra.mxu0 0
        %1370 = vmatprep.mubr.bf16.mxu0 0
        %1371 = vmatmul.mubr.bf16.gmra.mxu0 %v1333
        %v1372 = vpop.f32.mrf.mxu0
        %v1373 = vadd.f32 %v1326, %v1372
        %v1374 = vpop.f32.mrf.mxu0
        %v1375 = vpop.f32.mrf.mxu0
        %v1376 = vadd.f32 %v1329, %v1375
        %v1377 = vpop.f32.mrf.mxu0
        %1378 = vdwg.mxu0
        %1379 = vrot.lane.b32.xlu0 %v833, 112
        %v1380 = vpop.permute.xlu0 %1379
        %1381 = vrot.lane.b32.xlu0 %v833, 80
        %v1382 = vpop.permute.xlu0 %1381
        %v1384 = vsel %vm842, %v1380, 0
        %v1387 = vsel %vm842, %v1382, 0
        %1389 = vmatprep.subr.bf16.mxu0 0
        %1390 = vmatpush1.bf16.xpose.msra.mxu0 0
        %1391 = vmatprep.subr.bf16.mxu0 0
        %1392 = vmatpush1.bf16.xpose.msra.mxu0 0
        %1393 = vmatprep.subr.bf16.mxu0 0
        %1394 = vmatpush1.bf16.xpose.msra.mxu0 0
        %1395 = vmatprep.subr.bf16.mxu0 0
        %1396 = vmatpush1.bf16.xpose.msra.mxu0 0
        %1397 = vmatprep.subr.bf16.mxu0 0
        %1398 = vmatpush1.bf16.xpose.msra.mxu0 0
        %1399 = vmatprep.subr.bf16.mxu0 0
        %1400 = vmatpush1.bf16.xpose.msra.mxu0 0
        %1401 = vmatprep.subr.bf16.mxu0 0
        %1402 = vmatpush1.bf16.xpose.msra.mxu0 0
        %1403 = vmatprep.subr.bf16.mxu0 0
        %1404 = vmatpush1.bf16.xpose.msra.mxu0 %v1387
        %1405 = vmatprep.subr.bf16.mxu0 0
        %1406 = vmatpush2.bf16.xpose.msra.mxu0 0
        %1407 = vmatprep.subr.bf16.mxu0 0
        %1408 = vmatpush2.bf16.xpose.msra.mxu0 0
        %1409 = vmatprep.subr.bf16.mxu0 0
        %1410 = vmatpush2.bf16.xpose.msra.mxu0 0
        %1411 = vmatprep.subr.bf16.mxu0 0
        %1412 = vmatpush2.bf16.xpose.msra.mxu0 0
        %1413 = vmatprep.subr.bf16.mxu0 0
        %1414 = vmatpush2.bf16.xpose.msra.mxu0 0
        %1415 = vmatprep.subr.bf16.mxu0 0
        %1416 = vmatpush2.bf16.xpose.msra.mxu0 0
        %1417 = vmatprep.subr.bf16.mxu0 0
        %1418 = vmatpush2.bf16.xpose.msra.mxu0 0
        %1419 = vmatprep.subr.bf16.mxu0 0
        %1420 = vmatpush2.bf16.xpose.msra.mxu0 0
        %1421 = vmatprep.mubr.bf16.mxu0 0
        %1422 = vmatmul.mubr.bf16.gmra.mxu0 %v1384
        %v1423 = vpop.f32.mrf.mxu0
        %v1424 = vadd.f32 0.0, %v1423
        %v1425 = vpop.f32.mrf.mxu0
        %v1426 = vpop.f32.mrf.mxu0
        %v1427 = vpop.f32.mrf.mxu0
        %1428 = vdwg.mxu0
        %1429 = vrot.lane.b32.xlu0 %v834, 112
        %v1430 = vpop.permute.xlu0 %1429
        %1431 = vrot.lane.b32.xlu0 %v834, 80
        %v1432 = vpop.permute.xlu0 %1431
        %v1434 = vsel %vm842, %v1430, 0
        %v1437 = vsel %vm842, %v1432, 0
        %1439 = vmatprep.subr.bf16.mxu0 0
        %1440 = vmatpush1.bf16.xpose.msra.mxu0 0
        %1441 = vmatprep.subr.bf16.mxu0 0
        %1442 = vmatpush1.bf16.xpose.msra.mxu0 0
        %1443 = vmatprep.subr.bf16.mxu0 0
        %1444 = vmatpush1.bf16.xpose.msra.mxu0 0
        %1445 = vmatprep.subr.bf16.mxu0 0
        %1446 = vmatpush1.bf16.xpose.msra.mxu0 0
        %1447 = vmatprep.subr.bf16.mxu0 0
        %1448 = vmatpush1.bf16.xpose.msra.mxu0 0
        %1449 = vmatprep.subr.bf16.mxu0 0
        %1450 = vmatpush1.bf16.xpose.msra.mxu0 0
        %1451 = vmatprep.subr.bf16.mxu0 0
        %1452 = vmatpush1.bf16.xpose.msra.mxu0 0
        %1453 = vmatprep.subr.bf16.mxu0 0
        %1454 = vmatpush1.bf16.xpose.msra.mxu0 %v1437
        %1455 = vmatprep.subr.bf16.mxu0 0
        %1456 = vmatpush2.bf16.xpose.msra.mxu0 0
        %1457 = vmatprep.subr.bf16.mxu0 0
        %1458 = vmatpush2.bf16.xpose.msra.mxu0 0
        %1459 = vmatprep.subr.bf16.mxu0 0
        %1460 = vmatpush2.bf16.xpose.msra.mxu0 0
        %1461 = vmatprep.subr.bf16.mxu0 0
        %1462 = vmatpush2.bf16.xpose.msra.mxu0 0
        %1463 = vmatprep.subr.bf16.mxu0 0
        %1464 = vmatpush2.bf16.xpose.msra.mxu0 0
        %1465 = vmatprep.subr.bf16.mxu0 0
        %1466 = vmatpush2.bf16.xpose.msra.mxu0 0
        %1467 = vmatprep.subr.bf16.mxu0 0
        %1468 = vmatpush2.bf16.xpose.msra.mxu0 0
        %1469 = vmatprep.subr.bf16.mxu0 0
        %1470 = vmatpush2.bf16.xpose.msra.mxu0 0
        %1471 = vmatprep.mubr.bf16.mxu0 0
        %1472 = vmatmul.mubr.bf16.gmra.mxu0 %v1434
        %v1473 = vpop.f32.mrf.mxu0
        %v1474 = vadd.f32 0.0, %v1473
        %v1475 = vpop.f32.mrf.mxu0
        %v1476 = vpop.f32.mrf.mxu0
        %v1477 = vpop.f32.mrf.mxu0
        %1478 = vdwg.mxu0
        %v1479 = vmul.f32 %v1424, 0.35355338
        %v1480 = vmul.f32 %v1474, 0.35355338
        %v1481 = vsel %vm842, %v1479, -inf
        %1482 = vmax.xlane.f32.xlu0 %v1481
        %v1483 = vpop.xlane.xlu0 %1482
        %v1484 = vsel %vm842, %v1480, -inf
        %1485 = vmax.xlane.f32.xlu0 %v1484
        %v1486 = vpop.xlane.xlu0 %1485
        %v1487 = vsub.f32 %v1479, %v1483
        %v1488 = vsub.f32 %v1480, %v1486
        %v1489 = vmul.f32 %v1487, 1.442695
        %v1490 = vpow.pop %v1489
        %v1491 = vmul.f32 %v1488, 1.442695
        %v1492 = vpow.pop %v1491
        %v1493 = vsel %vm842, %v1490, 0.0
        %1494 = vadd.xlane.f32.xlu0 %v1493
        %v1495 = vpop.xlane.xlu0 %1494
        %v1496 = vsel %vm842, %v1492, 0.0
        %1497 = vadd.xlane.f32.xlu0 %v1496
        %v1498 = vpop.xlane.xlu0 %1497
        %v1499 = vrcp.pop %v1495
        %v1500 = vrcp.pop %v1498
        %v1501 = vmul.f32 %v1490, %v1499
        %v1502 = vmul.f32 %v1492, %v1500
        %v1503 = vpack.c.bf16 %v1501, %v1501
        %v1504 = vpack.c.bf16 %v1502, %v1502
        %1505 = vrot.lane.b32.xlu0 %v833, 48
        %v1506 = vpop.permute.xlu0 %1505
        %v1508 = vsel %vm842, %v1503, 0
        %v1511 = vsel %vm969, %v1506, 0
        %1513 = vmatprep.subr.bf16.mxu0 0
        %1514 = vmatpush1.bf16.msra.mxu0 0
        %1515 = vmatprep.subr.bf16.mxu0 0
        %1516 = vmatpush1.bf16.msra.mxu0 0
        %1517 = vmatprep.subr.bf16.mxu0 0
        %1518 = vmatpush1.bf16.msra.mxu0 0
        %1519 = vmatprep.subr.bf16.mxu0 0
        %1520 = vmatpush1.bf16.msra.mxu0 0
        %1521 = vmatprep.subr.bf16.mxu0 0
        %1522 = vmatpush1.bf16.msra.mxu0 0
        %1523 = vmatprep.subr.bf16.mxu0 0
        %1524 = vmatpush1.bf16.msra.mxu0 0
        %1525 = vmatprep.subr.bf16.mxu0 0
        %1526 = vmatpush1.bf16.msra.mxu0 0
        %1527 = vmatprep.subr.bf16.mxu0 0
        %1528 = vmatpush1.bf16.msra.mxu0 %v1511
        %1529 = vmatprep.subr.bf16.mxu0 0
        %1530 = vmatpush2.bf16.msra.mxu0 0
        %1531 = vmatprep.subr.bf16.mxu0 0
        %1532 = vmatpush2.bf16.msra.mxu0 0
        %1533 = vmatprep.subr.bf16.mxu0 0
        %1534 = vmatpush2.bf16.msra.mxu0 0
        %1535 = vmatprep.subr.bf16.mxu0 0
        %1536 = vmatpush2.bf16.msra.mxu0 0
        %1537 = vmatprep.subr.bf16.mxu0 0
        %1538 = vmatpush2.bf16.msra.mxu0 0
        %1539 = vmatprep.subr.bf16.mxu0 0
        %1540 = vmatpush2.bf16.msra.mxu0 0
        %1541 = vmatprep.subr.bf16.mxu0 0
        %1542 = vmatpush2.bf16.msra.mxu0 0
        %1543 = vmatprep.subr.bf16.mxu0 0
        %1544 = vmatpush2.bf16.msra.mxu0 0
        %1545 = vmatprep.mubr.bf16.mxu0 0
        %1546 = vmatmul.mubr.bf16.gmra.mxu0 %v1508
        %v1547 = vpop.f32.mrf.mxu0
        %v1548 = vadd.f32 0.0, %v1547
        %v1549 = vpop.f32.mrf.mxu0
        %v1550 = vpop.f32.mrf.mxu0
        %v1551 = vpop.f32.mrf.mxu0
        %1552 = vdwg.mxu0
        %1553 = vrot.lane.b32.xlu0 %v834, 48
        %v1554 = vpop.permute.xlu0 %1553
        %v1556 = vsel %vm842, %v1504, 0
        %v1559 = vsel %vm969, %v1554, 0
        %1561 = vmatprep.subr.bf16.mxu0 0
        %1562 = vmatpush1.bf16.msra.mxu0 0
        %1563 = vmatprep.subr.bf16.mxu0 0
        %1564 = vmatpush1.bf16.msra.mxu0 0
        %1565 = vmatprep.subr.bf16.mxu0 0
        %1566 = vmatpush1.bf16.msra.mxu0 0
        %1567 = vmatprep.subr.bf16.mxu0 0
        %1568 = vmatpush1.bf16.msra.mxu0 0
        %1569 = vmatprep.subr.bf16.mxu0 0
        %1570 = vmatpush1.bf16.msra.mxu0 0
        %1571 = vmatprep.subr.bf16.mxu0 0
        %1572 = vmatpush1.bf16.msra.mxu0 0
        %1573 = vmatprep.subr.bf16.mxu0 0
        %1574 = vmatpush1.bf16.msra.mxu0 0
        %1575 = vmatprep.subr.bf16.mxu0 0
        %1576 = vmatpush1.bf16.msra.mxu0 %v1559
        %1577 = vmatprep.subr.bf16.mxu0 0
        %1578 = vmatpush2.bf16.msra.mxu0 0
        %1579 = vmatprep.subr.bf16.mxu0 0
        %1580 = vmatpush2.bf16.msra.mxu0 0
        %1581 = vmatprep.subr.bf16.mxu0 0
        %1582 = vmatpush2.bf16.msra.mxu0 0
        %1583 = vmatprep.subr.bf16.mxu0 0
        %1584 = vmatpush2.bf16.msra.mxu0 0
        %1585 = vmatprep.subr.bf16.mxu0 0
        %1586 = vmatpush2.bf16.msra.mxu0 0
        %1587 = vmatprep.subr.bf16.mxu0 0
        %1588 = vmatpush2.bf16.msra.mxu0 0
        %1589 = vmatprep.subr.bf16.mxu0 0
        %1590 = vmatpush2.bf16.msra.mxu0 0
        %1591 = vmatprep.subr.bf16.mxu0 0
        %1592 = vmatpush2.bf16.msra.mxu0 0
        %1593 = vmatprep.mubr.bf16.mxu0 0
        %1594 = vmatmul.mubr.bf16.gmra.mxu0 %v1556
        %v1595 = vpop.f32.mrf.mxu0
        %v1596 = vadd.f32 0.0, %v1595
        %v1597 = vpop.f32.mrf.mxu0
        %v1598 = vpop.f32.mrf.mxu0
        %v1599 = vpop.f32.mrf.mxu0
        %1600 = vdwg.mxu0
        %v1601 = vpack.c.bf16 %v1596, %v1548
        %v1603 = vsel %vm842, %v1601, 0
        %v1606 = vsel %vm969, %v837, 0
        %1608 = vmatprep.subr.bf16.mxu0 0
        %1609 = vmatpush1.bf16.msra.mxu0 0
        %1610 = vmatprep.subr.bf16.mxu0 0
        %1611 = vmatpush1.bf16.msra.mxu0 0
        %1612 = vmatprep.subr.bf16.mxu0 0
        %1613 = vmatpush1.bf16.msra.mxu0 0
        %1614 = vmatprep.subr.bf16.mxu0 0
        %1615 = vmatpush1.bf16.msra.mxu0 0
        %1616 = vmatprep.subr.bf16.mxu0 0
        %1617 = vmatpush1.bf16.msra.mxu0 0
        %1618 = vmatprep.subr.bf16.mxu0 0
        %1619 = vmatpush1.bf16.msra.mxu0 0
        %1620 = vmatprep.subr.bf16.mxu0 0
        %1621 = vmatpush1.bf16.msra.mxu0 0
        %1622 = vmatprep.subr.bf16.mxu0 0
        %1623 = vmatpush1.bf16.msra.mxu0 %v1606
        %1624 = vmatprep.subr.bf16.mxu0 0
        %1625 = vmatpush2.bf16.msra.mxu0 0
        %1626 = vmatprep.subr.bf16.mxu0 0
        %1627 = vmatpush2.bf16.msra.mxu0 0
        %1628 = vmatprep.subr.bf16.mxu0 0
        %1629 = vmatpush2.bf16.msra.mxu0 0
        %1630 = vmatprep.subr.bf16.mxu0 0
        %1631 = vmatpush2.bf16.msra.mxu0 0
        %1632 = vmatprep.subr.bf16.mxu0 0
        %1633 = vmatpush2.bf16.msra.mxu0 0
        %1634 = vmatprep.subr.bf16.mxu0 0
        %1635 = vmatpush2.bf16.msra.mxu0 0
        %1636 = vmatprep.subr.bf16.mxu0 0
        %1637 = vmatpush2.bf16.msra.mxu0 0
        %1638 = vmatprep.subr.bf16.mxu0 0
        %1639 = vmatpush2.bf16.msra.mxu0 0
        %1640 = vmatprep.mubr.bf16.mxu0 0
        %1641 = vmatmul.mubr.bf16.gmra.mxu0 %v1603
        %v1642 = vpop.f32.mrf.mxu0
        %v1643 = vadd.f32 0.0, %v1642
        %v1644 = vpop.f32.mrf.mxu0
        %v1645 = vpop.f32.mrf.mxu0
        %v1646 = vadd.f32 0.0, %v1645
        %v1647 = vpop.f32.mrf.mxu0
        %1648 = vdwg.mxu0
        %v1649 = vadd.f32 %v1373, %v1643
        %v1650 = vadd.f32 %v1376, %v1646
        %1651 = vrot.lane.b32.xlu0 %v833, 104
        %v1652 = vpop.permute.xlu0 %1651
        %1653 = vrot.lane.b32.xlu0 %v833, 72
        %v1654 = vpop.permute.xlu0 %1653
        %v1656 = vsel %vm842, %v1652, 0
        %v1659 = vsel %vm842, %v1654, 0
        %1661 = vmatprep.subr.bf16.mxu0 0
        %1662 = vmatpush1.bf16.xpose.msra.mxu0 0
        %1663 = vmatprep.subr.bf16.mxu0 0
        %1664 = vmatpush1.bf16.xpose.msra.mxu0 0
        %1665 = vmatprep.subr.bf16.mxu0 0
        %1666 = vmatpush1.bf16.xpose.msra.mxu0 0
        %1667 = vmatprep.subr.bf16.mxu0 0
        %1668 = vmatpush1.bf16.xpose.msra.mxu0 0
        %1669 = vmatprep.subr.bf16.mxu0 0
        %1670 = vmatpush1.bf16.xpose.msra.mxu0 0
        %1671 = vmatprep.subr.bf16.mxu0 0
        %1672 = vmatpush1.bf16.xpose.msra.mxu0 0
        %1673 = vmatprep.subr.bf16.mxu0 0
        %1674 = vmatpush1.bf16.xpose.msra.mxu0 0
        %1675 = vmatprep.subr.bf16.mxu0 0
        %1676 = vmatpush1.bf16.xpose.msra.mxu0 %v1659
        %1677 = vmatprep.subr.bf16.mxu0 0
        %1678 = vmatpush2.bf16.xpose.msra.mxu0 0
        %1679 = vmatprep.subr.bf16.mxu0 0
        %1680 = vmatpush2.bf16.xpose.msra.mxu0 0
        %1681 = vmatprep.subr.bf16.mxu0 0
        %1682 = vmatpush2.bf16.xpose.msra.mxu0 0
        %1683 = vmatprep.subr.bf16.mxu0 0
        %1684 = vmatpush2.bf16.xpose.msra.mxu0 0
        %1685 = vmatprep.subr.bf16.mxu0 0
        %1686 = vmatpush2.bf16.xpose.msra.mxu0 0
        %1687 = vmatprep.subr.bf16.mxu0 0
        %1688 = vmatpush2.bf16.xpose.msra.mxu0 0
        %1689 = vmatprep.subr.bf16.mxu0 0
        %1690 = vmatpush2.bf16.xpose.msra.mxu0 0
        %1691 = vmatprep.subr.bf16.mxu0 0
        %1692 = vmatpush2.bf16.xpose.msra.mxu0 0
        %1693 = vmatprep.mubr.bf16.mxu0 0
        %1694 = vmatmul.mubr.bf16.gmra.mxu0 %v1656
        %v1695 = vpop.f32.mrf.mxu0
        %v1696 = vadd.f32 0.0, %v1695
        %v1697 = vpop.f32.mrf.mxu0
        %v1698 = vpop.f32.mrf.mxu0
        %v1699 = vpop.f32.mrf.mxu0
        %1700 = vdwg.mxu0
        %1701 = vrot.lane.b32.xlu0 %v834, 104
        %v1702 = vpop.permute.xlu0 %1701
        %1703 = vrot.lane.b32.xlu0 %v834, 72
        %v1704 = vpop.permute.xlu0 %1703
        %v1706 = vsel %vm842, %v1702, 0
        %v1709 = vsel %vm842, %v1704, 0
        %1711 = vmatprep.subr.bf16.mxu0 0
        %1712 = vmatpush1.bf16.xpose.msra.mxu0 0
        %1713 = vmatprep.subr.bf16.mxu0 0
        %1714 = vmatpush1.bf16.xpose.msra.mxu0 0
        %1715 = vmatprep.subr.bf16.mxu0 0
        %1716 = vmatpush1.bf16.xpose.msra.mxu0 0
        %1717 = vmatprep.subr.bf16.mxu0 0
        %1718 = vmatpush1.bf16.xpose.msra.mxu0 0
        %1719 = vmatprep.subr.bf16.mxu0 0
        %1720 = vmatpush1.bf16.xpose.msra.mxu0 0
        %1721 = vmatprep.subr.bf16.mxu0 0
        %1722 = vmatpush1.bf16.xpose.msra.mxu0 0
        %1723 = vmatprep.subr.bf16.mxu0 0
        %1724 = vmatpush1.bf16.xpose.msra.mxu0 0
        %1725 = vmatprep.subr.bf16.mxu0 0
        %1726 = vmatpush1.bf16.xpose.msra.mxu0 %v1709
        %1727 = vmatprep.subr.bf16.mxu0 0
        %1728 = vmatpush2.bf16.xpose.msra.mxu0 0
        %1729 = vmatprep.subr.bf16.mxu0 0
        %1730 = vmatpush2.bf16.xpose.msra.mxu0 0
        %1731 = vmatprep.subr.bf16.mxu0 0
        %1732 = vmatpush2.bf16.xpose.msra.mxu0 0
        %1733 = vmatprep.subr.bf16.mxu0 0
        %1734 = vmatpush2.bf16.xpose.msra.mxu0 0
        %1735 = vmatprep.subr.bf16.mxu0 0
        %1736 = vmatpush2.bf16.xpose.msra.mxu0 0
        %1737 = vmatprep.subr.bf16.mxu0 0
        %1738 = vmatpush2.bf16.xpose.msra.mxu0 0
        %1739 = vmatprep.subr.bf16.mxu0 0
        %1740 = vmatpush2.bf16.xpose.msra.mxu0 0
        %1741 = vmatprep.subr.bf16.mxu0 0
        %1742 = vmatpush2.bf16.xpose.msra.mxu0 0
        %1743 = vmatprep.mubr.bf16.mxu0 0
        %1744 = vmatmul.mubr.bf16.gmra.mxu0 %v1706
        %v1745 = vpop.f32.mrf.mxu0
        %v1746 = vadd.f32 0.0, %v1745
        %v1747 = vpop.f32.mrf.mxu0
        %v1748 = vpop.f32.mrf.mxu0
        %v1749 = vpop.f32.mrf.mxu0
        %1750 = vdwg.mxu0
        %v1751 = vmul.f32 %v1696, 0.35355338
        %v1752 = vmul.f32 %v1746, 0.35355338
        %v1753 = vsel %vm842, %v1751, -inf
        %1754 = vmax.xlane.f32.xlu0 %v1753
        %v1755 = vpop.xlane.xlu0 %1754
        %v1756 = vsel %vm842, %v1752, -inf
        %1757 = vmax.xlane.f32.xlu0 %v1756
        %v1758 = vpop.xlane.xlu0 %1757
        %v1759 = vsub.f32 %v1751, %v1755
        %v1760 = vsub.f32 %v1752, %v1758
        %v1761 = vmul.f32 %v1759, 1.442695
        %v1762 = vpow.pop %v1761
        %v1763 = vmul.f32 %v1760, 1.442695
        %v1764 = vpow.pop %v1763
        %v1765 = vsel %vm842, %v1762, 0.0
        %1766 = vadd.xlane.f32.xlu0 %v1765
        %v1767 = vpop.xlane.xlu0 %1766
        %v1768 = vsel %vm842, %v1764, 0.0
        %1769 = vadd.xlane.f32.xlu0 %v1768
        %v1770 = vpop.xlane.xlu0 %1769
        %v1771 = vrcp.pop %v1767
        %v1772 = vrcp.pop %v1770
        %v1773 = vmul.f32 %v1762, %v1771
        %v1774 = vmul.f32 %v1764, %v1772
        %v1775 = vpack.c.bf16 %v1773, %v1773
        %v1776 = vpack.c.bf16 %v1774, %v1774
        %1777 = vrot.lane.b32.xlu0 %v833, 40
        %v1778 = vpop.permute.xlu0 %1777
        %v1780 = vsel %vm842, %v1775, 0
        %v1783 = vsel %vm969, %v1778, 0
        %1785 = vmatprep.subr.bf16.mxu0 0
        %1786 = vmatpush1.bf16.msra.mxu0 0
        %1787 = vmatprep.subr.bf16.mxu0 0
        %1788 = vmatpush1.bf16.msra.mxu0 0
        %1789 = vmatprep.subr.bf16.mxu0 0
        %1790 = vmatpush1.bf16.msra.mxu0 0
        %1791 = vmatprep.subr.bf16.mxu0 0
        %1792 = vmatpush1.bf16.msra.mxu0 0
        %1793 = vmatprep.subr.bf16.mxu0 0
        %1794 = vmatpush1.bf16.msra.mxu0 0
        %1795 = vmatprep.subr.bf16.mxu0 0
        %1796 = vmatpush1.bf16.msra.mxu0 0
        %1797 = vmatprep.subr.bf16.mxu0 0
        %1798 = vmatpush1.bf16.msra.mxu0 0
        %1799 = vmatprep.subr.bf16.mxu0 0
        %1800 = vmatpush1.bf16.msra.mxu0 %v1783
        %1801 = vmatprep.subr.bf16.mxu0 0
        %1802 = vmatpush2.bf16.msra.mxu0 0
        %1803 = vmatprep.subr.bf16.mxu0 0
        %1804 = vmatpush2.bf16.msra.mxu0 0
        %1805 = vmatprep.subr.bf16.mxu0 0
        %1806 = vmatpush2.bf16.msra.mxu0 0
        %1807 = vmatprep.subr.bf16.mxu0 0
        %1808 = vmatpush2.bf16.msra.mxu0 0
        %1809 = vmatprep.subr.bf16.mxu0 0
        %1810 = vmatpush2.bf16.msra.mxu0 0
        %1811 = vmatprep.subr.bf16.mxu0 0
        %1812 = vmatpush2.bf16.msra.mxu0 0
        %1813 = vmatprep.subr.bf16.mxu0 0
        %1814 = vmatpush2.bf16.msra.mxu0 0
        %1815 = vmatprep.subr.bf16.mxu0 0
        %1816 = vmatpush2.bf16.msra.mxu0 0
        %1817 = vmatprep.mubr.bf16.mxu0 0
        %1818 = vmatmul.mubr.bf16.gmra.mxu0 %v1780
        %v1819 = vpop.f32.mrf.mxu0
        %v1820 = vadd.f32 0.0, %v1819
        %v1821 = vpop.f32.mrf.mxu0
        %v1822 = vpop.f32.mrf.mxu0
        %v1823 = vpop.f32.mrf.mxu0
        %1824 = vdwg.mxu0
        %1825 = vrot.lane.b32.xlu0 %v834, 40
        %v1826 = vpop.permute.xlu0 %1825
        %v1828 = vsel %vm842, %v1776, 0
        %v1831 = vsel %vm969, %v1826, 0
        %1833 = vmatprep.subr.bf16.mxu0 0
        %1834 = vmatpush1.bf16.msra.mxu0 0
        %1835 = vmatprep.subr.bf16.mxu0 0
        %1836 = vmatpush1.bf16.msra.mxu0 0
        %1837 = vmatprep.subr.bf16.mxu0 0
        %1838 = vmatpush1.bf16.msra.mxu0 0
        %1839 = vmatprep.subr.bf16.mxu0 0
        %1840 = vmatpush1.bf16.msra.mxu0 0
        %1841 = vmatprep.subr.bf16.mxu0 0
        %1842 = vmatpush1.bf16.msra.mxu0 0
        %1843 = vmatprep.subr.bf16.mxu0 0
        %1844 = vmatpush1.bf16.msra.mxu0 0
        %1845 = vmatprep.subr.bf16.mxu0 0
        %1846 = vmatpush1.bf16.msra.mxu0 0
        %1847 = vmatprep.subr.bf16.mxu0 0
        %1848 = vmatpush1.bf16.msra.mxu0 %v1831
        %1849 = vmatprep.subr.bf16.mxu0 0
        %1850 = vmatpush2.bf16.msra.mxu0 0
        %1851 = vmatprep.subr.bf16.mxu0 0
        %1852 = vmatpush2.bf16.msra.mxu0 0
        %1853 = vmatprep.subr.bf16.mxu0 0
        %1854 = vmatpush2.bf16.msra.mxu0 0
        %1855 = vmatprep.subr.bf16.mxu0 0
        %1856 = vmatpush2.bf16.msra.mxu0 0
        %1857 = vmatprep.subr.bf16.mxu0 0
        %1858 = vmatpush2.bf16.msra.mxu0 0
        %1859 = vmatprep.subr.bf16.mxu0 0
        %1860 = vmatpush2.bf16.msra.mxu0 0
        %1861 = vmatprep.subr.bf16.mxu0 0
        %1862 = vmatpush2.bf16.msra.mxu0 0
        %1863 = vmatprep.subr.bf16.mxu0 0
        %1864 = vmatpush2.bf16.msra.mxu0 0
        %1865 = vmatprep.mubr.bf16.mxu0 0
        %1866 = vmatmul.mubr.bf16.gmra.mxu0 %v1828
        %v1867 = vpop.f32.mrf.mxu0
        %v1868 = vadd.f32 0.0, %v1867
        %v1869 = vpop.f32.mrf.mxu0
        %v1870 = vpop.f32.mrf.mxu0
        %v1871 = vpop.f32.mrf.mxu0
        %1872 = vdwg.mxu0
        %v1873 = vpack.c.bf16 %v1868, %v1820
        %v1875 = vsel %vm842, %v1873, 0
        %v1878 = vsel %vm969, %v838, 0
        %1880 = vmatprep.subr.bf16.mxu0 0
        %1881 = vmatpush1.bf16.msra.mxu0 0
        %1882 = vmatprep.subr.bf16.mxu0 0
        %1883 = vmatpush1.bf16.msra.mxu0 0
        %1884 = vmatprep.subr.bf16.mxu0 0
        %1885 = vmatpush1.bf16.msra.mxu0 0
        %1886 = vmatprep.subr.bf16.mxu0 0
        %1887 = vmatpush1.bf16.msra.mxu0 0
        %1888 = vmatprep.subr.bf16.mxu0 0
        %1889 = vmatpush1.bf16.msra.mxu0 0
        %1890 = vmatprep.subr.bf16.mxu0 0
        %1891 = vmatpush1.bf16.msra.mxu0 0
        %1892 = vmatprep.subr.bf16.mxu0 0
        %1893 = vmatpush1.bf16.msra.mxu0 0
        %1894 = vmatprep.subr.bf16.mxu0 0
        %1895 = vmatpush1.bf16.msra.mxu0 %v1878
        %1896 = vmatprep.subr.bf16.mxu0 0
        %1897 = vmatpush2.bf16.msra.mxu0 0
        %1898 = vmatprep.subr.bf16.mxu0 0
        %1899 = vmatpush2.bf16.msra.mxu0 0
        %1900 = vmatprep.subr.bf16.mxu0 0
        %1901 = vmatpush2.bf16.msra.mxu0 0
        %1902 = vmatprep.subr.bf16.mxu0 0
        %1903 = vmatpush2.bf16.msra.mxu0 0
        %1904 = vmatprep.subr.bf16.mxu0 0
        %1905 = vmatpush2.bf16.msra.mxu0 0
        %1906 = vmatprep.subr.bf16.mxu0 0
        %1907 = vmatpush2.bf16.msra.mxu0 0
        %1908 = vmatprep.subr.bf16.mxu0 0
        %1909 = vmatpush2.bf16.msra.mxu0 0
        %1910 = vmatprep.subr.bf16.mxu0 0
        %1911 = vmatpush2.bf16.msra.mxu0 0
        %1912 = vmatprep.mubr.bf16.mxu0 0
        %1913 = vmatmul.mubr.bf16.gmra.mxu0 %v1875
        %v1914 = vpop.f32.mrf.mxu0
        %v1915 = vadd.f32 0.0, %v1914
        %v1916 = vpop.f32.mrf.mxu0
        %v1917 = vpop.f32.mrf.mxu0
        %v1918 = vadd.f32 0.0, %v1917
        %v1919 = vpop.f32.mrf.mxu0
        %1920 = vdwg.mxu0
        %v1921 = vadd.f32 %v1649, %v1915
        %v1922 = vadd.f32 %v1650, %v1918
        %v1923 = vadd.f32 %v703, %v1921
        %v1924 = vadd.f32 %v704, %v1922
        %v1925 = vld [vmem:[%s663] sm:$0x1]
        %v1927 = vlaneseq
        %v1928 = vshrl.u32 %v1927, 7
        %v1929 = vsub.s32 0, %v1928
        %v1930 = vrot.slane %v1925, %v1929
        %v1932 = vadd.f32 %v1923, %v1930
        %v1933 = vadd.f32 %v1924, %v1930
        %v1934 = vld [vmem:[%s672] sm:$0x1]
        %v1935 = vld [vmem:[%s675] sm:$0x1]
        %v1936 = vsel %vm707, %v1932, 0.0
        %1937 = vadd.xlane.f32.xlu0 %v1936
        %v1938 = vpop.xlane.xlu0 %1937
        %v1939 = vsel %vm707, %v1933, 0.0
        %1940 = vadd.xlane.f32.xlu0 %v1939
        %v1941 = vpop.xlane.xlu0 %1940
        %v1942 = vmul.f32 %v1938, %v714
        %v1943 = vmul.f32 %v1941, %v714
        %v1944 = vsub.f32 %v1932, %v1942
        %v1945 = vsub.f32 %v1933, %v1943
        %v1946 = vmul.f32 %v1944, %v1944
        %v1947 = vmul.f32 %v1945, %v1945
        %v1948 = vsel %vm707, %v1946, 0.0
        %1949 = vadd.xlane.f32.xlu0 %v1948
        %v1950 = vpop.xlane.xlu0 %1949
        %v1951 = vsel %vm707, %v1947, 0.0
        %1952 = vadd.xlane.f32.xlu0 %v1951
        %v1953 = vpop.xlane.xlu0 %1952
        %v1954 = vmul.f32 %v1950, 0.032258064
        %v1955 = vmul.f32 %v1953, 0.032258064
        %v1956 = vrsqrt.pop %v1954
        %v1957 = vmul.f32 %v1954, %v1956
        %vm1958 = vcmp.eq.f32.partialorder %v1954, inf
        %v1959 = vsel %vm1958, %v1954, %v1957
        %vm1960 = vcmp.eq.f32.partialorder %v1954, 0.0
        %v1961 = vand.u32 %v1954, 2147483648
        %v1962 = vsel %vm1960, %v1961, %v1959
        %v1963 = vrsqrt.pop %v1955
        %v1964 = vmul.f32 %v1955, %v1963
        %vm1965 = vcmp.eq.f32.partialorder %v1955, inf
        %v1966 = vsel %vm1965, %v1955, %v1964
        %vm1967 = vcmp.eq.f32.partialorder %v1955, 0.0
        %v1968 = vand.u32 %v1955, 2147483648
        %v1969 = vsel %vm1967, %v1968, %v1966
        %v1970 = vadd.f32 %v1962, 1e-06
        %v1971 = vadd.f32 %v1969, 1e-06
        %v1972 = vrcp.pop %v1970
        %v1973 = vrcp.pop %v1971
        %v1974 = vmul.f32 %v1944, %v1972
        %v1975 = vmul.f32 %v1945, %v1973
        %v1977 = vlaneseq
        %v1978 = vshrl.u32 %v1977, 7
        %v1979 = vsub.s32 0, %v1978
        %v1980 = vrot.slane %v1934, %v1979
        %v1982 = vmul.f32 %v1980, %v1974
        %v1983 = vmul.f32 %v1980, %v1975
        %v1985 = vlaneseq
        %v1986 = vshrl.u32 %v1985, 7
        %v1987 = vsub.s32 0, %v1986
        %v1988 = vrot.slane %v1935, %v1987
        %v1990 = vadd.f32 %v1982, %v1988
        %v1991 = vadd.f32 %v1983, %v1988
        %v1992 = vpack.c.bf16 %v1991, %v1990
        %v1993 = vld [vmem:[%s680] sm:$0xf]
        %v1994 = vld [vmem:[%s680 + $0x4] sm:$0xf]
        %v1995 = vld [vmem:[%s680 + $0x8] sm:$0xf]
        %v1996 = vld [vmem:[%s680 + $0xc] sm:$0xf]
        %v1997 = vld [vmem:[%s683] sm:$0x1]
        %v1999 = vlaneseq
        %v2000 = vshrl.u32 %v1999, 7
        %v2001 = vsub.s32 0, %v2000
        %v2002 = vrot.slane %v1997, %v2001
        %v2008 = vunpack.c.l.b16 %v1993
        %v2009 = vunpack.c.l.b16 %v1994
        %v2010 = vunpack.c.l.b16 %v1995
        %v2011 = vunpack.c.l.b16 %v1996
        %v2012 = vpack.c.b16 %v2009, %v2008
        %v2013 = vpack.c.b16 %v2011, %v2010
        %v2017 = vsel %vm707, %v1992, 0
        %2019 = vmatprep.subr.bf16.mxu0 0
        %2020 = vmatpush1.bf16.msra.mxu0 0
        %2021 = vmatprep.subr.bf16.mxu0 0
        %2022 = vmatpush1.bf16.msra.mxu0 0
        %2023 = vmatprep.subr.bf16.mxu0 0
        %2024 = vmatpush1.bf16.msra.mxu0 0
        %2025 = vmatprep.subr.bf16.mxu0 0
        %2026 = vmatpush1.bf16.msra.mxu0 0
        %2027 = vmatprep.subr.bf16.mxu0 0
        %2028 = vmatpush1.bf16.msra.mxu0 0
        %2029 = vmatprep.subr.bf16.mxu0 0
        %2030 = vmatpush1.bf16.msra.mxu0 0
        %2031 = vmatprep.subr.bf16.mxu0 0
        %2032 = vmatpush1.bf16.msra.mxu0 %v2013
        %2033 = vmatprep.subr.bf16.mxu0 0
        %2034 = vmatpush1.bf16.msra.mxu0 %v2012
        %2035 = vmatprep.subr.bf16.mxu0 0
        %2036 = vmatpush2.bf16.msra.mxu0 0
        %2037 = vmatprep.subr.bf16.mxu0 0
        %2038 = vmatpush2.bf16.msra.mxu0 0
        %2039 = vmatprep.subr.bf16.mxu0 0
        %2040 = vmatpush2.bf16.msra.mxu0 0
        %2041 = vmatprep.subr.bf16.mxu0 0
        %2042 = vmatpush2.bf16.msra.mxu0 0
        %2043 = vmatprep.subr.bf16.mxu0 0
        %2044 = vmatpush2.bf16.msra.mxu0 0
        %2045 = vmatprep.subr.bf16.mxu0 0
        %2046 = vmatpush2.bf16.msra.mxu0 0
        %2047 = vmatprep.subr.bf16.mxu0 0
        %2048 = vmatpush2.bf16.msra.mxu0 0
        %2049 = vmatprep.subr.bf16.mxu0 0
        %2050 = vmatpush2.bf16.msra.mxu0 0
        %2051 = vmatprep.mubr.bf16.mxu0 0
        %2052 = vmatmul.mubr.bf16.gmra.mxu0 %v2017
        %v2053 = vpop.f32.mrf.mxu0
        %v2054 = vadd.f32 %v2002, %v2053
        %v2055 = vpop.f32.mrf.mxu0
        %v2056 = vpop.f32.mrf.mxu0
        %v2057 = vadd.f32 %v2002, %v2056
        %v2058 = vpop.f32.mrf.mxu0
        %2059 = vdwg.mxu0
        %v2060 = vmax.f32 %v2054, 0.0
        %v2061 = vmax.f32 %v2057, 0.0
        %v2062 = vpack.c.bf16 %v2061, %v2060
        %v2063 = vld [vmem:[%s688] sm:$0xf]
        %v2064 = vld [vmem:[%s688 + $0x4] sm:$0xf]
        %v2065 = vld [vmem:[%s688 + $0x8] sm:$0xf]
        %v2066 = vld [vmem:[%s688 + $0xc] sm:$0xf]
        %v2067 = vld [vmem:[%s688 + $0x10] sm:$0xf]
        %v2068 = vld [vmem:[%s688 + $0x14] sm:$0xf]
        %v2069 = vld [vmem:[%s688 + $0x18] sm:$0xf]
        %v2070 = vld [vmem:[%s688 + $0x1c] sm:$0xf]
        %v2071 = vld [vmem:[%s691] sm:$0x1]
        %v2073 = vlaneseq
        %v2074 = vshrl.u32 %v2073, 7
        %v2075 = vsub.s32 0, %v2074
        %v2076 = vrot.slane %v2071, %v2075
        %v2086 = vunpack.c.l.b16 %v2063
        %v2087 = vunpack.c.l.b16 %v2064
        %v2088 = vunpack.c.l.b16 %v2065
        %v2089 = vunpack.c.l.b16 %v2066
        %v2090 = vunpack.c.l.b16 %v2067
        %v2091 = vunpack.c.l.b16 %v2068
        %v2092 = vunpack.c.l.b16 %v2069
        %v2093 = vunpack.c.l.b16 %v2070
        %v2094 = vpack.c.b16 %v2087, %v2086
        %v2095 = vpack.c.b16 %v2089, %v2088
        %v2096 = vpack.c.b16 %v2091, %v2090
        %v2097 = vpack.c.b16 %v2093, %v2092
        %vm2102 = vcmask 523264
        %v2104 = vsel %vm2102, %v2062, 0
        %2106 = vmatprep.subr.bf16.mxu0 0
        %2107 = vmatpush1.bf16.msra.mxu0 0
        %2108 = vmatprep.subr.bf16.mxu0 0
        %2109 = vmatpush1.bf16.msra.mxu0 0
        %2110 = vmatprep.subr.bf16.mxu0 0
        %2111 = vmatpush1.bf16.msra.mxu0 0
        %2112 = vmatprep.subr.bf16.mxu0 0
        %2113 = vmatpush1.bf16.msra.mxu0 0
        %2114 = vmatprep.subr.bf16.mxu0 0
        %2115 = vmatpush1.bf16.msra.mxu0 %v2097
        %2116 = vmatprep.subr.bf16.mxu0 0
        %2117 = vmatpush1.bf16.msra.mxu0 %v2096
        %2118 = vmatprep.subr.bf16.mxu0 0
        %2119 = vmatpush1.bf16.msra.mxu0 %v2095
        %2120 = vmatprep.subr.bf16.mxu0 0
        %2121 = vmatpush1.bf16.msra.mxu0 %v2094
        %2122 = vmatprep.subr.bf16.mxu0 0
        %2123 = vmatpush2.bf16.msra.mxu0 0
        %2124 = vmatprep.subr.bf16.mxu0 0
        %2125 = vmatpush2.bf16.msra.mxu0 0
        %2126 = vmatprep.subr.bf16.mxu0 0
        %2127 = vmatpush2.bf16.msra.mxu0 0
        %2128 = vmatprep.subr.bf16.mxu0 0
        %2129 = vmatpush2.bf16.msra.mxu0 0
        %2130 = vmatprep.subr.bf16.mxu0 0
        %2131 = vmatpush2.bf16.msra.mxu0 0
        %2132 = vmatprep.subr.bf16.mxu0 0
        %2133 = vmatpush2.bf16.msra.mxu0 0
        %2134 = vmatprep.subr.bf16.mxu0 0
        %2135 = vmatpush2.bf16.msra.mxu0 0
        %2136 = vmatprep.subr.bf16.mxu0 0
        %2137 = vmatpush2.bf16.msra.mxu0 0
        %2138 = vmatprep.mubr.bf16.mxu0 0
        %2139 = vmatmul.mubr.bf16.gmra.mxu0 %v2104
        %v2140 = vpop.f32.mrf.mxu0
        %v2141 = vadd.f32 %v2076, %v2140
        %v2142 = vpop.f32.mrf.mxu0
        %v2143 = vpop.f32.mrf.mxu0
        %v2144 = vadd.f32 %v2076, %v2143
        %v2145 = vpop.f32.mrf.mxu0
        %2146 = vdwg.mxu0
        %v2147 = vadd.f32 %v1932, %v2141
        %v2148 = vadd.f32 %v1933, %v2144
        %2149 = vst.msk [vmem:[#allocation2] sm:$0xff] %vm707, %v2147
        %2150 = vst.msk [vmem:[#allocation2 + $0x8] sm:$0xff] %vm707, %v2148
        %p2151 = scmp.eq.s32.totalorder %s32, 1
        // Predicated region
        $region85: #{encoder_forward.1} parent=79 // pred_check
          %p2152 = pneg %p2151
        $region86: #{encoder_forward.1} parent=79 // pred_check_branch
          %2154 = sbr.rel (%p2152) target = $region88
        $region87: #{encoder_forward.1} parent=79 // pred_region
          %v2155 = vld [vmem:[%s13] sm:$0x1]
          %v2156 = vld [vmem:[%s14] sm:$0x1]
          %v2157 = vsel %vm707, %v2147, 0.0
          %2158 = vadd.xlane.f32.xlu0 %v2157
          %v2159 = vpop.xlane.xlu0 %2158
          %v2160 = vsel %vm707, %v2148, 0.0
          %2161 = vadd.xlane.f32.xlu0 %v2160
          %v2162 = vpop.xlane.xlu0 %2161
          %v2163 = vmul.f32 %v2159, %v714
          %v2164 = vmul.f32 %v2162, %v714
          %v2165 = vsub.f32 %v2147, %v2163
          %v2166 = vsub.f32 %v2148, %v2164
          %v2167 = vmul.f32 %v2165, %v2165
          %v2168 = vmul.f32 %v2166, %v2166
          %v2169 = vsel %vm707, %v2167, 0.0
          %2170 = vadd.xlane.f32.xlu0 %v2169
          %v2171 = vpop.xlane.xlu0 %2170
          %v2172 = vsel %vm707, %v2168, 0.0
          %2173 = vadd.xlane.f32.xlu0 %v2172
          %v2174 = vpop.xlane.xlu0 %2173
          %v2175 = vmul.f32 %v2171, 0.032258064
          %v2176 = vmul.f32 %v2174, 0.032258064
          %v2177 = vrsqrt.pop %v2175
          %v2178 = vmul.f32 %v2175, %v2177
          %vm2179 = vcmp.eq.f32.partialorder %v2175, inf
          %v2180 = vsel %vm2179, %v2175, %v2178
          %vm2181 = vcmp.eq.f32.partialorder %v2175, 0.0
          %v2182 = vand.u32 %v2175, 2147483648
          %v2183 = vsel %vm2181, %v2182, %v2180
          %v2184 = vrsqrt.pop %v2176
          %v2185 = vmul.f32 %v2176, %v2184
          %vm2186 = vcmp.eq.f32.partialorder %v2176, inf
          %v2187 = vsel %vm2186, %v2176, %v2185
          %vm2188 = vcmp.eq.f32.partialorder %v2176, 0.0
          %v2189 = vand.u32 %v2176, 2147483648
          %v2190 = vsel %vm2188, %v2189, %v2187
          %v2191 = vadd.f32 %v2183, 1e-06
          %v2192 = vadd.f32 %v2190, 1e-06
          %v2193 = vrcp.pop %v2191
          %v2194 = vrcp.pop %v2192
          %v2195 = vmul.f32 %v2165, %v2193
          %v2196 = vmul.f32 %v2166, %v2194
          %v2198 = vlaneseq
          %v2199 = vshrl.u32 %v2198, 7
          %v2200 = vsub.s32 0, %v2199
          %v2201 = vrot.slane %v2155, %v2200
          %v2203 = vmul.f32 %v2201, %v2195
          %v2204 = vmul.f32 %v2201, %v2196
          %v2206 = vlaneseq
          %v2207 = vshrl.u32 %v2206, 7
          %v2208 = vsub.s32 0, %v2207
          %v2209 = vrot.slane %v2156, %v2208
          %v2211 = vadd.f32 %v2203, %v2209
          %v2212 = vadd.f32 %v2204, %v2209
          %2213 = vst.msk [vmem:[#allocation3] sm:$0xff] %vm707, %v2211
          %2214 = vst.msk [vmem:[#allocation3 + $0x8] sm:$0xff] %vm707, %v2212
        $region88: #{encoder_forward.1} parent=79 // pred_fallthru
          _
        // Predicated region
        $region89: #{encoder_forward.1} parent=79 // pred_check
          %p2215 = pneg %p437
        $region90: #{encoder_forward.1} parent=79 // pred_check_branch
          %2217 = sbr.rel (%p2215) target = $region92
        $region91: #{encoder_forward.1} parent=79 // pred_region
          %s2218 = smul.u32 2, %s31
          %s2220 = ssub.s32 256, 256
          %2221 = vsyncadd [#allocation4], %s2220
          %s2222 = smul.addr %s2218, 128
          %s2223 = scalar_lea.hbm %s15, %s2222
          %s2224 = sshll.u32 [#allocation3], 4
          %s2225 = int_to_ptr.vmem [resolvable:$true] %s2224
          %2230 = dma.vmem_to_hbm [thread:$0]  %s2225, 256, %s2223, [#allocation4], 128, 128, 8
        $region92: #{encoder_forward.1} parent=79 // pred_fallthru
          _
        // Predicated region
        $region93: #{encoder_forward.1} parent=79 // pred_check
          %p2231 = pneg %p437
        $region94: #{encoder_forward.1} parent=79 // pred_check_branch
          %2233 = sbr.rel (%p2231) target = $region96
        $region95: #{encoder_forward.1} parent=79 // pred_region
          %2234 = dma.done [#allocation4], 256
        $region96: #{encoder_forward.1} parent=79 // pred_fallthru
          _
      $region80: #{encoder_forward.1} parent=5 // pred_fallthru
        _
      %p2235 = scmp.le.s32.totalorder 2, %s22
      // Predicated region
      $region97: #{encoder_forward.1} parent=5 // pred_check
        %p2236 = pneg %p2235
      $region98: #{encoder_forward.1} parent=5 // pred_check_branch
        %2238 = sbr.rel (%p2236) target = $region100
      $region99: #{encoder_forward.1} parent=5 // pred_region
        %s2239 = ssub.s32 %s22, 2
      $region100: #{encoder_forward.1} parent=5 // pred_fallthru
        _
    $region6: #{encoder_forward.1} parent=1 // loop_footer
      %s26 = sadd.s32 1, %s22
    $region7: #{encoder_forward.1} parent=1 // loop_footer_branch
      %21 = sbr.rel target = $region3
    $region8: #{encoder_forward.1} parent=1 // loop_exit
      _
    %2240 = vsyncpa [#allocation4], 1
    %s2241 = scalar_lea.sflag [#allocation4], 1
    %2242 = vsyncpa %s2241, 1

</llo_original>
